<compile_context>
chip_gen: v7x
topology: tpu7x:2x2x1
jax: 0.10.0
libtpu: 0.0.40
codegen_flags: <defaults>
</compile_context>

<pallas_src>
import functools

import numpy as np

import jax
import jax.numpy as jnp
from jax import lax
from jax.experimental import pallas as pl
from jax.experimental.pallas import tpu as pltpu


# ----------------------------------------------------------------------------- helpers


def _ceil_to(x, m):
    return (x + m - 1) // m * m


def _pad_axis(a, size, axis):
    pad = size - a.shape[axis]
    if pad <= 0:
        return a
    cfg = [(0, 0)] * a.ndim
    cfg[axis] = (0, pad)
    return jnp.pad(a, cfg)


def _pack_w(w_oihw):
    """(Cout, C, 3, 3) OIHW -> (Cout, 9*C); column index = (ky*3 + kx)*C + c."""
    co, c = w_oihw.shape[:2]
    return jnp.transpose(w_oihw, (0, 2, 3, 1)).reshape(co, 9 * c)


def fold_bn(gamma, beta, running_mean, running_var, eps=1e-5):
    scale = gamma / jnp.sqrt(running_var + eps)
    return scale, beta - running_mean * scale


def _tile_vmem_estimate(TH, W, Cc_p, Cout_p, Cout_out, in_bytes):
    """Rough per-grid-step VMEM bytes (double-buffered I/O + in-kernel intermediates)."""
    RW = (TH + 4) * W
    TL = TH * W
    est = 0
    est += 2 * Cc_p * RW * in_bytes                    # activation tile (x2 buffers)
    est += 2 * RW * 4                                  # row-validity mask
    est += 2 * 3 * RW * 4                              # column masks
    est += 2 * Cout_out * TL * in_bytes                # output tile
    est += 2 * (Cout_p * 9 * Cc_p + Cout_p * 9 * Cout_p) * 2   # bf16 packed weights
    est += 2 * Cout_p * 4 * 2                          # biases
    est += 9 * Cc_p * RW * 2                           # conv1 taps (bf16)
    est += 9 * Cout_p * RW * 2                         # conv2 taps (bf16)
    est += 2 * Cout_p * RW * 4                         # y1 / f32 temporaries
    est += Cc_p * RW * 4                               # rolled f32 temporary
    return est


def _choose_row_tile(H, W, est_fn, budget):
    """Largest row tile TH dividing H with TH*W % 128 == 0 (or TH == H) fitting the budget."""
    allowed = [th for th in range(1, H + 1)
               if H % th == 0 and ((th * W) % 128 == 0 or th == H)]
    fitting = [th for th in allowed if est_fn(th) <= budget]
    return max(fitting) if fitting else min(allowed)


# ----------------------------------------------------------------------------- kernel


def _decoder_block_kernel(a_ref, rv_ref, cm_ref, w1_ref, w2_ref, b1_ref, b2_ref,
                          o_ref, *, W, RW, TL, Cout_out, compute_dtype):
    """Fused DecoderBlock forward for one (batch, row-tile) grid point.

    a_ref:  (1, 1, Cc_p, RW)  [upsample(x) ; skip] tile with 2-row zero halo, lane-dense rows*W
    rv_ref: (1, 1, RW)        per-tile row-validity mask (1 where the row is inside the image)
    cm_ref: (3, RW)           column-boundary masks for dx = -1, 0, +1
    w1_ref: (Cout_p, 9*Cc_p)  conv1 weights (BN1 scale folded), bf16
    w2_ref: (Cout_p, 9*Cout_p) conv2 weights (BN2 scale folded), bf16
    b1_ref, b2_ref: (Cout_p, 1) folded BN biases (f32)
    o_ref:  (1, Cout_out, TL) interior output rows of this tile
    """
    a = a_ref[0, 0].astype(jnp.float32)              # (Cc_p, RW)
    rv = rv_ref[0]                                    # (1, RW)
    cm = cm_ref[...]                                  # (3, RW)

    def taps(t):
        """(C, RW) f32 -> (9*C, RW) bf16: the nine 3x3 shifts, column-zero-padded, cast per tap."""
        parts = []
        for dy in (-1, 0, 1):
            for dx in (-1, 0, 1):
                shift = (-(dy * W + dx)) % RW         # shifted[p] = t[p + dy*W + dx]
                r = pltpu.roll(t, shift, 1) if shift else t
                if dx != 0:                           # image left/right boundary zero-padding
                    r = r * cm[dx + 1:dx + 2, :]      # mask-mult in f32 (v5e VPU), cast after
                parts.append(r.astype(compute_dtype))
        return jnp.concatenate(parts, axis=0)

    # conv1 over [upsample(x) ; skip] (BN1 scale folded into w1) + bias + ReLU
    y1 = jnp.dot(w1_ref[...], taps(a), preferred_element_type=jnp.float32)
    y1 = jnp.maximum(y1 + b1_ref[...], 0.0)           # (Cout_p, RW), stays on-chip
    # zero the rows that fall outside the image: this is conv2's zero padding in the row
    # direction and also kills the roll-wrap garbage in the first/last halo rows.
    y1 = y1 * rv

    # conv2 (BN2 scale folded into w2) + bias + ReLU
    y2 = jnp.dot(w2_ref[...], taps(y1), preferred_element_type=jnp.float32)
    y2 = jnp.maximum(y2 + b2_ref[...], 0.0)

    # drop the 2-row halo: rotate the interior to the front (XLU) and do an aligned prefix
    # slice, then a lane-dense store of the valid output channels only.
    y2 = pltpu.roll(y2, (-(2 * W)) % RW, 1)
    o_ref[...] = y2[None, :Cout_out, :TL].astype(o_ref.dtype)


# ----------------------------------------------------------------------------- wrapper


def decoder_block_forward(x_nchw, skip_nchw, params, scale_factor,
                          compute_dtype=jnp.bfloat16, row_tile=None,
                          vmem_budget_bytes=40 << 20):
    """JAX/Pallas equivalent of DecoderBlock.forward (NCHW in / NCHW out, inference BN)."""
    N, Cin, Hin, Win = x_nchw.shape
    s = int(scale_factor)
    H, W = Hin * s, Win * s
    L = H * W

    w1, w2 = params["w1"], params["w2"]              # OIHW (PyTorch layout)
    Cout = w1.shape[0]
    Cs = 0 if skip_nchw is None else skip_nchw.shape[1]
    assert w1.shape[1] == Cin + Cs and w2.shape[1] == Cout

    # inference BatchNorm folded to per-channel scale/bias; scale folded into the weights
    s1, b1 = fold_bn(params["bn1_gamma"], params["bn1_beta"],
                     params["bn1_mean"], params["bn1_var"])
    s2, b2 = fold_bn(params["bn2_gamma"], params["bn2_beta"],
                     params["bn2_mean"], params["bn2_var"])

    Cc = Cin + Cs
    Cc_p = _ceil_to(Cc, 16)                          # bf16: two rows per sublane -> 16-align
    Cout_p = _ceil_to(Cout, 16)
    # output channels the kernel actually stores (avoids the post-kernel slice when possible)
    Cout_out = Cout if Cout % 8 == 0 else _ceil_to(Cout, 8)

    in_bytes = jnp.dtype(x_nchw.dtype).itemsize
    est_fn = lambda th: _tile_vmem_estimate(th, W, Cc_p, Cout_p, Cout_out, in_bytes)
    TH = int(row_tile) if row_tile is not None else _choose_row_tile(H, W, est_fn,
                                                                     vmem_budget_bytes)
    assert H % TH == 0 and ((TH * W) % 128 == 0 or TH == H), "invalid row tile"
    T = H // TH
    R = TH + 4                                       # 2-row halo each side (1 per conv)
    RW = R * W
    TL = TH * W

    # ---- packed weights (BN scale folded), bf16, contraction = 9 * channels ----
    w1_packed = _pack_w(_pad_axis(w1, Cc_p, 1)) * s1[:, None]
    w2_packed = _pack_w(_pad_axis(w2, Cout_p, 1)) * s2[:, None]
    w1_packed = _pad_axis(w1_packed, Cout_p, 0).astype(compute_dtype)
    w2_packed = _pad_axis(w2_packed, Cout_p, 0).astype(compute_dtype)
    b1c = _pad_axis(b1.reshape(Cout, 1), Cout_p, 0).astype(jnp.float32)
    b2c = _pad_axis(b2.reshape(Cout, 1), Cout_p, 0).astype(jnp.float32)

    # ---- activations: exact nearest upsample + concat + channel pad + 2-row-halo tiles ----
    x_up = jnp.repeat(jnp.repeat(x_nchw, s, axis=2), s, axis=3)          # (N, Cin, H, W)
    a = x_up if skip_nchw is None else jnp.concatenate([x_up, skip_nchw], axis=1)
    a = _pad_axis(a, Cc_p, 1)                                            # (N, Cc_p, H, W)
    a = jnp.pad(a, ((0, 0), (0, 0), (2, 2), (0, 0)))                     # zero 2-row halo
    tiles = jnp.stack([a[:, :, t * TH:t * TH + R, :] for t in range(T)], axis=1)
    tiles = tiles.reshape(N, T, Cc_p, RW)                                # lane-dense rows*W

    # ---- static masks (numpy, trace-time) ----
    pw = np.arange(RW) % W
    cm = np.stack([(pw >= 1), np.ones(RW, bool), (pw <= W - 2)], axis=0).astype(np.float32)
    lrow = np.arange(RW) // W
    grow = (np.arange(T)[:, None] * TH - 2) + lrow[None, :]
    rowvalid = ((grow >= 0) & (grow < H)).astype(np.float32).reshape(T, 1, RW)

    kernel = functools.partial(_decoder_block_kernel, W=W, RW=RW, TL=TL,
                               Cout_out=Cout_out, compute_dtype=compute_dtype)

    vmem_limit = int(min(max(est_fn(TH) * 1.5, 32 << 20), 64 << 20))     # 64 MiB valid on v7x

    out = pl.pallas_call(
        kernel,
        out_shape=jax.ShapeDtypeStruct((N, Cout_out, L), x_nchw.dtype),
        grid=(N, T),
        in_specs=[
            pl.BlockSpec((1, 1, Cc_p, RW), lambda n, t: (n, t, 0, 0)),
            pl.BlockSpec((1, 1, RW), lambda n, t: (t, 0, 0)),
            pl.BlockSpec((3, RW), lambda n, t: (0, 0)),
            pl.BlockSpec(w1_packed.shape, lambda n, t: (0, 0)),
            pl.BlockSpec(w2_packed.shape, lambda n, t: (0, 0)),
            pl.BlockSpec((Cout_p, 1), lambda n, t: (0, 0)),
            pl.BlockSpec((Cout_p, 1), lambda n, t: (0, 0)),
        ],
        out_specs=pl.BlockSpec((1, Cout_out, TL), lambda n, t: (n, 0, t)),
        compiler_params=pltpu.CompilerParams(
            dimension_semantics=("parallel", "parallel"),
            vmem_limit_bytes=vmem_limit),
    )(tiles, jnp.asarray(rowvalid), jnp.asarray(cm), w1_packed, w2_packed, b1c, b2c)

    out = out.reshape(N, Cout_out, H, W)
    return out if Cout_out == Cout else out[:, :Cout]


# ----------------------------------------------------------------------------- reference


def reference_forward(x_nchw, skip_nchw, params, scale_factor):
    """Pure-JAX reference (NCHW) for correctness checking."""
    x = jnp.repeat(jnp.repeat(x_nchw, scale_factor, axis=2), scale_factor, axis=3)
    if skip_nchw is not None:
        x = jnp.concatenate([x, skip_nchw], axis=1)

    def conv_bn_relu(h, w, gamma, beta, mean, var):
        y = lax.conv_general_dilated(
            h, w, window_strides=(1, 1), padding="SAME",
            dimension_numbers=("NCHW", "OIHW", "NCHW"))
        sc, bi = fold_bn(gamma, beta, mean, var)
        return jnp.maximum(y * sc[None, :, None, None] + bi[None, :, None, None], 0.0)

    x = conv_bn_relu(x, params["w1"], params["bn1_gamma"], params["bn1_beta"],
                     params["bn1_mean"], params["bn1_var"])
    x = conv_bn_relu(x, params["w2"], params["bn2_gamma"], params["bn2_beta"],
                     params["bn2_mean"], params["bn2_var"])
    return x


def init_params(key, in_channels, skip_channels, out_channels):
    k1, k2, k3, k4 = jax.random.split(key, 4)
    c_in1 = in_channels + skip_channels
    return {
        "w1": 0.1 * jax.random.normal(k1, (out_channels, c_in1, 3, 3), jnp.float32),
        "w2": 0.1 * jax.random.normal(k2, (out_channels, out_channels, 3, 3), jnp.float32),
        "bn1_gamma": 1.0 + 0.1 * jax.random.normal(k3, (out_channels,), jnp.float32),
        "bn1_beta": 0.05 * jnp.arange(out_channels, dtype=jnp.float32),
        "bn1_mean": 0.01 * jnp.arange(out_channels, dtype=jnp.float32),
        "bn1_var": jnp.ones((out_channels,), jnp.float32),
        "bn2_gamma": 1.0 + 0.1 * jax.random.normal(k4, (out_channels,), jnp.float32),
        "bn2_beta": -0.02 * jnp.arange(out_channels, dtype=jnp.float32),
        "bn2_mean": 0.02 * jnp.arange(out_channels, dtype=jnp.float32),
        "bn2_var": 1.5 * jnp.ones((out_channels,), jnp.float32),
    }


if __name__ == "__main__":
    key = jax.random.PRNGKey(0)
    kx, ks, kp = jax.random.split(key, 3)

    # DecoderBlock(in_channels=4, skip_channel=4, output_channel=8, scale_factor=2)
    in_channels, skip_channels, out_channels, scale_factor = 4, 4, 8, 2
    N, Hin, Win = 2, 8, 8                            # x is NCHW (PyTorch convention)

    x = jax.random.normal(kx, (N, in_channels, Hin, Win), jnp.float32)
    skip = jax.random.normal(
        ks, (N, skip_channels, Hin * scale_factor, Win * scale_factor), jnp.float32)
    params = init_params(kp, in_channels, skip_channels, out_channels)
    ref = reference_forward(x, skip, params, scale_factor)

    # default configuration (auto row tile; single tile at this toy size)
    fwd = jax.jit(functools.partial(decoder_block_forward, scale_factor=scale_factor))
    out = jax.block_until_ready(fwd(x, skip, params))
    assert out.shape == (N, out_channels, Hin * scale_factor, Win * scale_factor)
    err = float(jnp.max(jnp.abs(out - ref)))
    # bf16 MXU operands with f32 accumulation -> relaxed tolerance.
    assert jnp.allclose(out, ref, atol=5e-2, rtol=5e-2), f"max abs err = {err}"

    # forced spatial row tiling (T=2) to exercise the 2-row-halo tile path
    fwd_tiled = jax.jit(functools.partial(decoder_block_forward,
                                          scale_factor=scale_factor, row_tile=8))
    out_t = jax.block_until_ready(fwd_tiled(x, skip, params))
    err_t = float(jnp.max(jnp.abs(out_t - ref)))
    assert jnp.allclose(out_t, ref, atol=5e-2, rtol=5e-2), f"max abs err (tiled) = {err_t}"

    print("KERNEL_OK")
</pallas_src>

<mosaic_0001>
module attributes {stable_mosaic.version = 11 : i64} {
  func.func @_decoder_block_kernel(%arg0: i32, %arg1: i32, %arg2: memref<1x1x16x320xf32, #tpu.memory_space<vmem>>, %arg3: memref<1x1x320xf32, #tpu.memory_space<vmem>>, %arg4: memref<3x320xf32, #tpu.memory_space<vmem>>, %arg5: memref<16x144xbf16, #tpu.memory_space<vmem>>, %arg6: memref<16x144xbf16, #tpu.memory_space<vmem>>, %arg7: memref<16x1xf32, #tpu.memory_space<vmem>>, %arg8: memref<16x1xf32, #tpu.memory_space<vmem>>, %arg9: memref<1x8x256xf32, #tpu.memory_space<vmem>>) attributes {dimension_semantics = [#tpu.dimension_semantics<parallel>, #tpu.dimension_semantics<parallel>], iteration_bounds = array<i64: 2, 1>, scalar_prefetch = 0 : i64, scratch_operands = 0 : i64, tpu.core_type = #tpu.core_type<tc>, window_params = [{transform_indices = @transform_0, window_bounds = array<i64: 1, 1, 16, 320>}, {transform_indices = @transform_1, window_bounds = array<i64: 1, 1, 320>}, {pipeline_mode = #tpu.pipeline_mode<synchronous>, transform_indices = @transform_2, window_bounds = array<i64: 3, 320>}, {pipeline_mode = #tpu.pipeline_mode<synchronous>, transform_indices = @transform_3, window_bounds = array<i64: 16, 144>}, {pipeline_mode = #tpu.pipeline_mode<synchronous>, transform_indices = @transform_4, window_bounds = array<i64: 16, 144>}, {pipeline_mode = #tpu.pipeline_mode<synchronous>, transform_indices = @transform_5, window_bounds = array<i64: 16, 1>}, {pipeline_mode = #tpu.pipeline_mode<synchronous>, transform_indices = @transform_6, window_bounds = array<i64: 16, 1>}, {transform_indices = @transform_7, window_bounds = array<i64: 1, 8, 256>}]} {
    %c0 = arith.constant 0 : index
    %c0_0 = arith.constant 0 : index
    %c0_1 = arith.constant 0 : index
    %c0_2 = arith.constant 0 : index
    %0 = vector.load %arg2[%c0, %c0_0, %c0_1, %c0_2] : memref<1x1x16x320xf32, #tpu.memory_space<vmem>>, vector<1x1x16x320xf32>
    %1 = vector.shape_cast %0 : vector<1x1x16x320xf32> to vector<16x320xf32>
    %c0_3 = arith.constant 0 : index
    %c0_4 = arith.constant 0 : index
    %c0_5 = arith.constant 0 : index
    %2 = vector.load %arg3[%c0_3, %c0_4, %c0_5] : memref<1x1x320xf32, #tpu.memory_space<vmem>>, vector<1x1x320xf32>
    %3 = vector.shape_cast %2 : vector<1x1x320xf32> to vector<1x320xf32>
    %c0_6 = arith.constant 0 : index
    %c0_7 = arith.constant 0 : index
    %4 = vector.load %arg4[%c0_6, %c0_7] : memref<3x320xf32, #tpu.memory_space<vmem>>, vector<3x320xf32>
    %c0_8 = arith.constant 0 : index
    %c0_9 = arith.constant 0 : index
    %5 = vector.load %arg5[%c0_8, %c0_9] : memref<16x144xbf16, #tpu.memory_space<vmem>>, vector<16x144xbf16>
    %c17_i32 = arith.constant 17 : i32
    %6 = tpu.dynamic_rotate %1 by %c17_i32 dim 1 : vector<16x320xf32>, i32 -> vector<16x320xf32>
    %7 = vector.extract_strided_slice %4 {offsets = [0, 0], sizes = [1, 320], strides = [1, 1]} : vector<3x320xf32> to vector<1x320xf32>
    %8 = vector.broadcast %7 : vector<1x320xf32> to vector<16x320xf32>
    %9 = arith.mulf %6, %8 : vector<16x320xf32>
    %10 = arith.truncf %9 : vector<16x320xf32> to vector<16x320xbf16>
    %c16_i32 = arith.constant 16 : i32
    %11 = tpu.dynamic_rotate %1 by %c16_i32 dim 1 : vector<16x320xf32>, i32 -> vector<16x320xf32>
    %12 = arith.truncf %11 : vector<16x320xf32> to vector<16x320xbf16>
    %c15_i32 = arith.constant 15 : i32
    %13 = tpu.dynamic_rotate %1 by %c15_i32 dim 1 : vector<16x320xf32>, i32 -> vector<16x320xf32>
    %14 = vector.extract_strided_slice %4 {offsets = [2, 0], sizes = [1, 320], strides = [1, 1]} : vector<3x320xf32> to vector<1x320xf32>
    %15 = vector.broadcast %14 : vector<1x320xf32> to vector<16x320xf32>
    %16 = arith.mulf %13, %15 : vector<16x320xf32>
    %17 = arith.truncf %16 : vector<16x320xf32> to vector<16x320xbf16>
    %c1_i32 = arith.constant 1 : i32
    %18 = tpu.dynamic_rotate %1 by %c1_i32 dim 1 : vector<16x320xf32>, i32 -> vector<16x320xf32>
    %19 = vector.extract_strided_slice %4 {offsets = [0, 0], sizes = [1, 320], strides = [1, 1]} : vector<3x320xf32> to vector<1x320xf32>
    %20 = vector.broadcast %19 : vector<1x320xf32> to vector<16x320xf32>
    %21 = arith.mulf %18, %20 : vector<16x320xf32>
    %22 = arith.truncf %21 : vector<16x320xf32> to vector<16x320xbf16>
    %23 = arith.truncf %1 : vector<16x320xf32> to vector<16x320xbf16>
    %c319_i32 = arith.constant 319 : i32
    %24 = tpu.dynamic_rotate %1 by %c319_i32 dim 1 : vector<16x320xf32>, i32 -> vector<16x320xf32>
    %25 = vector.extract_strided_slice %4 {offsets = [2, 0], sizes = [1, 320], strides = [1, 1]} : vector<3x320xf32> to vector<1x320xf32>
    %26 = vector.broadcast %25 : vector<1x320xf32> to vector<16x320xf32>
    %27 = arith.mulf %24, %26 : vector<16x320xf32>
    %28 = arith.truncf %27 : vector<16x320xf32> to vector<16x320xbf16>
    %c305_i32 = arith.constant 305 : i32
    %29 = tpu.dynamic_rotate %1 by %c305_i32 dim 1 : vector<16x320xf32>, i32 -> vector<16x320xf32>
    %30 = vector.extract_strided_slice %4 {offsets = [0, 0], sizes = [1, 320], strides = [1, 1]} : vector<3x320xf32> to vector<1x320xf32>
    %31 = vector.broadcast %30 : vector<1x320xf32> to vector<16x320xf32>
    %32 = arith.mulf %29, %31 : vector<16x320xf32>
    %33 = arith.truncf %32 : vector<16x320xf32> to vector<16x320xbf16>
    %c304_i32 = arith.constant 304 : i32
    %34 = tpu.dynamic_rotate %1 by %c304_i32 dim 1 : vector<16x320xf32>, i32 -> vector<16x320xf32>
    %35 = arith.truncf %34 : vector<16x320xf32> to vector<16x320xbf16>
    %c303_i32 = arith.constant 303 : i32
    %36 = tpu.dynamic_rotate %1 by %c303_i32 dim 1 : vector<16x320xf32>, i32 -> vector<16x320xf32>
    %37 = vector.extract_strided_slice %4 {offsets = [2, 0], sizes = [1, 320], strides = [1, 1]} : vector<3x320xf32> to vector<1x320xf32>
    %38 = vector.broadcast %37 : vector<1x320xf32> to vector<16x320xf32>
    %39 = arith.mulf %36, %38 : vector<16x320xf32>
    %40 = arith.truncf %39 : vector<16x320xf32> to vector<16x320xbf16>
    %41 = tpu.concatenate %10, %12, %17, %22, %23, %28, %33, %35, %40 in 0 : vector<16x320xbf16>, vector<16x320xbf16>, vector<16x320xbf16>, vector<16x320xbf16>, vector<16x320xbf16>, vector<16x320xbf16>, vector<16x320xbf16>, vector<16x320xbf16>, vector<16x320xbf16> -> vector<144x320xbf16>
    %cst = arith.constant dense<0.000000e+00> : vector<16x320xf32>
    %42 = tpu.matmul %5, %41, %cst {dimension_numbers = #tpu.dot_dimension_numbers<[1], [0], [0], [1], [0, 0, 1, 1], [], []>} : vector<16x144xbf16>, vector<144x320xbf16>, vector<16x320xf32> -> vector<16x320xf32>
    %c0_10 = arith.constant 0 : index
    %c0_11 = arith.constant 0 : index
    %43 = vector.load %arg7[%c0_10, %c0_11] : memref<16x1xf32, #tpu.memory_space<vmem>>, vector<16x1xf32>
    %44 = vector.broadcast %43 : vector<16x1xf32> to vector<16x320xf32>
    %45 = arith.addf %42, %44 : vector<16x320xf32>
    %cst_12 = arith.constant 0.000000e+00 : f32
    %46 = vector.broadcast %cst_12 : f32 to vector<16x320xf32>
    %47 = arith.maximumf %45, %46 : vector<16x320xf32>
    %48 = vector.broadcast %3 : vector<1x320xf32> to vector<16x320xf32>
    %49 = arith.mulf %47, %48 : vector<16x320xf32>
    %c0_13 = arith.constant 0 : index
    %c0_14 = arith.constant 0 : index
    %50 = vector.load %arg6[%c0_13, %c0_14] : memref<16x144xbf16, #tpu.memory_space<vmem>>, vector<16x144xbf16>
    %c17_i32_15 = arith.constant 17 : i32
    %51 = tpu.dynamic_rotate %49 by %c17_i32_15 dim 1 : vector<16x320xf32>, i32 -> vector<16x320xf32>
    %52 = vector.extract_strided_slice %4 {offsets = [0, 0], sizes = [1, 320], strides = [1, 1]} : vector<3x320xf32> to vector<1x320xf32>
    %53 = vector.broadcast %52 : vector<1x320xf32> to vector<16x320xf32>
    %54 = arith.mulf %51, %53 : vector<16x320xf32>
    %55 = arith.truncf %54 : vector<16x320xf32> to vector<16x320xbf16>
    %c16_i32_16 = arith.constant 16 : i32
    %56 = tpu.dynamic_rotate %49 by %c16_i32_16 dim 1 : vector<16x320xf32>, i32 -> vector<16x320xf32>
    %57 = arith.truncf %56 : vector<16x320xf32> to vector<16x320xbf16>
    %c15_i32_17 = arith.constant 15 : i32
    %58 = tpu.dynamic_rotate %49 by %c15_i32_17 dim 1 : vector<16x320xf32>, i32 -> vector<16x320xf32>
    %59 = vector.extract_strided_slice %4 {offsets = [2, 0], sizes = [1, 320], strides = [1, 1]} : vector<3x320xf32> to vector<1x320xf32>
    %60 = vector.broadcast %59 : vector<1x320xf32> to vector<16x320xf32>
    %61 = arith.mulf %58, %60 : vector<16x320xf32>
    %62 = arith.truncf %61 : vector<16x320xf32> to vector<16x320xbf16>
    %c1_i32_18 = arith.constant 1 : i32
    %63 = tpu.dynamic_rotate %49 by %c1_i32_18 dim 1 : vector<16x320xf32>, i32 -> vector<16x320xf32>
    %64 = vector.extract_strided_slice %4 {offsets = [0, 0], sizes = [1, 320], strides = [1, 1]} : vector<3x320xf32> to vector<1x320xf32>
    %65 = vector.broadcast %64 : vector<1x320xf32> to vector<16x320xf32>
    %66 = arith.mulf %63, %65 : vector<16x320xf32>
    %67 = arith.truncf %66 : vector<16x320xf32> to vector<16x320xbf16>
    %68 = arith.truncf %49 : vector<16x320xf32> to vector<16x320xbf16>
    %c319_i32_19 = arith.constant 319 : i32
    %69 = tpu.dynamic_rotate %49 by %c319_i32_19 dim 1 : vector<16x320xf32>, i32 -> vector<16x320xf32>
    %70 = vector.extract_strided_slice %4 {offsets = [2, 0], sizes = [1, 320], strides = [1, 1]} : vector<3x320xf32> to vector<1x320xf32>
    %71 = vector.broadcast %70 : vector<1x320xf32> to vector<16x320xf32>
    %72 = arith.mulf %69, %71 : vector<16x320xf32>
    %73 = arith.truncf %72 : vector<16x320xf32> to vector<16x320xbf16>
    %c305_i32_20 = arith.constant 305 : i32
    %74 = tpu.dynamic_rotate %49 by %c305_i32_20 dim 1 : vector<16x320xf32>, i32 -> vector<16x320xf32>
    %75 = vector.extract_strided_slice %4 {offsets = [0, 0], sizes = [1, 320], strides = [1, 1]} : vector<3x320xf32> to vector<1x320xf32>
    %76 = vector.broadcast %75 : vector<1x320xf32> to vector<16x320xf32>
    %77 = arith.mulf %74, %76 : vector<16x320xf32>
    %78 = arith.truncf %77 : vector<16x320xf32> to vector<16x320xbf16>
    %c304_i32_21 = arith.constant 304 : i32
    %79 = tpu.dynamic_rotate %49 by %c304_i32_21 dim 1 : vector<16x320xf32>, i32 -> vector<16x320xf32>
    %80 = arith.truncf %79 : vector<16x320xf32> to vector<16x320xbf16>
    %c303_i32_22 = arith.constant 303 : i32
    %81 = tpu.dynamic_rotate %49 by %c303_i32_22 dim 1 : vector<16x320xf32>, i32 -> vector<16x320xf32>
    %82 = vector.extract_strided_slice %4 {offsets = [2, 0], sizes = [1, 320], strides = [1, 1]} : vector<3x320xf32> to vector<1x320xf32>
    %83 = vector.broadcast %82 : vector<1x320xf32> to vector<16x320xf32>
    %84 = arith.mulf %81, %83 : vector<16x320xf32>
    %85 = arith.truncf %84 : vector<16x320xf32> to vector<16x320xbf16>
    %86 = tpu.concatenate %55, %57, %62, %67, %68, %73, %78, %80, %85 in 0 : vector<16x320xbf16>, vector<16x320xbf16>, vector<16x320xbf16>, vector<16x320xbf16>, vector<16x320xbf16>, vector<16x320xbf16>, vector<16x320xbf16>, vector<16x320xbf16>, vector<16x320xbf16> -> vector<144x320xbf16>
    %cst_23 = arith.constant dense<0.000000e+00> : vector<16x320xf32>
    %87 = tpu.matmul %50, %86, %cst_23 {dimension_numbers = #tpu.dot_dimension_numbers<[1], [0], [0], [1], [0, 0, 1, 1], [], []>} : vector<16x144xbf16>, vector<144x320xbf16>, vector<16x320xf32> -> vector<16x320xf32>
    %c0_24 = arith.constant 0 : index
    %c0_25 = arith.constant 0 : index
    %88 = vector.load %arg8[%c0_24, %c0_25] : memref<16x1xf32, #tpu.memory_space<vmem>>, vector<16x1xf32>
    %89 = vector.broadcast %88 : vector<16x1xf32> to vector<16x320xf32>
    %90 = arith.addf %87, %89 : vector<16x320xf32>
    %cst_26 = arith.constant 0.000000e+00 : f32
    %91 = vector.broadcast %cst_26 : f32 to vector<16x320xf32>
    %92 = arith.maximumf %90, %91 : vector<16x320xf32>
    %c288_i32 = arith.constant 288 : i32
    %93 = tpu.dynamic_rotate %92 by %c288_i32 dim 1 : vector<16x320xf32>, i32 -> vector<16x320xf32>
    %94 = vector.extract_strided_slice %93 {offsets = [0, 0], sizes = [8, 256], strides = [1, 1]} : vector<16x320xf32> to vector<8x256xf32>
    %95 = vector.shape_cast %94 : vector<8x256xf32> to vector<1x8x256xf32>
    %c0_27 = arith.constant 0 : index
    %c0_28 = arith.constant 0 : index
    %c0_29 = arith.constant 0 : index
    %96 = vector.load %arg9[%c0_27, %c0_28, %c0_29] : memref<1x8x256xf32, #tpu.memory_space<vmem>>, vector<1x8x256xf32>
    tpu.vector_store %arg9[%c0_27, %c0_28, %c0_29], %95 {strides = array<i32>} : memref<1x8x256xf32, #tpu.memory_space<vmem>>, vector<1x8x256xf32>,
    return
  }
  func.func @transform_0(%arg0: i32, %arg1: i32) -> (i32, i32, i32, i32) {
    %c0_i32 = arith.constant 0 : i32
    %c0_i32_0 = arith.constant 0 : i32
    %c0_i32_1 = arith.constant 0 : i32
    return %arg0, %arg1, %c0_i32, %c0_i32_0 : i32, i32, i32, i32
  }
  func.func @transform_1(%arg0: i32, %arg1: i32) -> (i32, i32, i32) {
    %c0_i32 = arith.constant 0 : i32
    %c0_i32_0 = arith.constant 0 : i32
    %c0_i32_1 = arith.constant 0 : i32
    return %arg1, %c0_i32, %c0_i32_0 : i32, i32, i32
  }
  func.func @transform_2(%arg0: i32, %arg1: i32) -> (i32, i32) {
    %c0_i32 = arith.constant 0 : i32
    %c0_i32_0 = arith.constant 0 : i32
    %c0_i32_1 = arith.constant 0 : i32
    return %c0_i32, %c0_i32_0 : i32, i32
  }
  func.func @transform_3(%arg0: i32, %arg1: i32) -> (i32, i32) {
    %c0_i32 = arith.constant 0 : i32
    %c0_i32_0 = arith.constant 0 : i32
    %c0_i32_1 = arith.constant 0 : i32
    return %c0_i32, %c0_i32_0 : i32, i32
  }
  func.func @transform_4(%arg0: i32, %arg1: i32) -> (i32, i32) {
    %c0_i32 = arith.constant 0 : i32
    %c0_i32_0 = arith.constant 0 : i32
    %c0_i32_1 = arith.constant 0 : i32
    return %c0_i32, %c0_i32_0 : i32, i32
  }
  func.func @transform_5(%arg0: i32, %arg1: i32) -> (i32, i32) {
    %c0_i32 = arith.constant 0 : i32
    %c0_i32_0 = arith.constant 0 : i32
    %c0_i32_1 = arith.constant 0 : i32
    return %c0_i32, %c0_i32_0 : i32, i32
  }
  func.func @transform_6(%arg0: i32, %arg1: i32) -> (i32, i32) {
    %c0_i32 = arith.constant 0 : i32
    %c0_i32_0 = arith.constant 0 : i32
    %c0_i32_1 = arith.constant 0 : i32
    return %c0_i32, %c0_i32_0 : i32, i32
  }
  func.func @transform_7(%arg0: i32, %arg1: i32) -> (i32, i32, i32) {
    %c0_i32 = arith.constant 0 : i32
    %c0_i32_0 = arith.constant 0 : i32
    return %arg0, %c0_i32, %arg1 : i32, i32, i32
  }
}

</mosaic_0001>

<llo_original>
// kernel: decoder_block_forward.1
$region0: #{decoder_block_forward.1}
  #allocation0 [shape = 'u32[]', space=smem, size = 0x4, offset = 0x4, fixed_abs, tag = 'smem constant byte address 0x4 - core index']
  #allocation1 [shape = 'u32[144,128]{1,0:T(1,128)}', space=vmem, size = 0x12000, scoped, tag = 'internal scratch']
  %s0 = inlined_call_operand.vmem [shape: f32[2,1,16,320], index: 0, kind: input, shape index: {}]
  %s1 = inlined_call_operand.vmem [shape: f32[1,1,320], index: 1, kind: input, shape index: {}]
  %s2 = inlined_call_operand.vmem [shape: f32[3,320], index: 2, kind: input, shape index: {}]
  %s3 = inlined_call_operand.vmem [shape: bf16[16,144], index: 3, kind: input, shape index: {}]
  %s4 = inlined_call_operand.vmem [shape: bf16[16,144], index: 4, kind: input, shape index: {}]
  %s5 = inlined_call_operand.vmem [shape: f32[16,1], index: 5, kind: input, shape index: {}]
  %s6 = inlined_call_operand.vmem [shape: f32[16,1], index: 6, kind: input, shape index: {}]
  %s7 = inlined_call_operand.vmem [shape: f32[2,8,256], index: 7, kind: output, shape index: {}]
  %s8 = sld [smem:[#allocation0]]
  $region61: #{decoder_block_forward.1} parent=0
    _
  %s10 = ssub.s32 1, %s8
  %s11 = scalar_select 0, %s10, %s8
  loop: start=0, step=1, limit=4
  $region2: #{decoder_block_forward.1} parent=0 // loop_pre_header
    _
  $region3: #{decoder_block_forward.1} parent=0 // loop_header
    %s13 = sphi 0, %s17
    %p14 = scmp.ge.s32.totalorder %s13, 4
    %s20 = sphi 0, %s32
    %s21 = sphi 0, %s28
    %s22 = sphi 0, %s20
    %s23 = sphi 0, %s21
    %s24 = sphi 0, %s22
    %s25 = sphi 0, %s23
    %s37 = sphi 0, %s39
    %s40 = sphi 0, %s37
    %s41 = sphi 0, %s40
    %s57 = sphi 0, %s41
    %s63 = sphi 0, %s65
    %s66 = sphi 0, %s63
    %s67 = sphi 0, %s66
    %s83 = sphi 0, %s67
    %s87 = sphi 0, %s87
    %s89 = sphi 0, %s87
    %s90 = sphi 0, %s89
    %s104 = sphi 0, %s90
    %s108 = sphi 0, %s108
    %s110 = sphi 0, %s108
    %s111 = sphi 0, %s110
    %s125 = sphi 0, %s111
    %s129 = sphi 0, %s129
    %s131 = sphi 0, %s129
    %s132 = sphi 0, %s131
    %s146 = sphi 0, %s132
    %s150 = sphi 0, %s150
    %s152 = sphi 0, %s150
    %s153 = sphi 0, %s152
    %s167 = sphi 0, %s153
    %s171 = sphi 0, %s171
    %s173 = sphi 0, %s171
    %s174 = sphi 0, %s173
    %s188 = sphi 0, %s174
    %s196 = sphi 0, %s198
    %s199 = sphi 0, %s196
    %s200 = sphi 0, %s199
    %s216 = sphi 0, %s200
  $region4: #{decoder_block_forward.1} parent=0 // loop_header_branch
    %16 = sbr.rel (%p14) target = $region8
  $region5: #{decoder_block_forward.1} parent=0 // loop_body
    %s18 = ssub.s32 %s13, 1
    %s19 = ssub.s32 %s13, 2
    %s26 = sadd.s32 1, %s21
    %p27 = scmp.ge.s32.totalorder %s26, 1
    %s28 = scalar_select %p27, 0, %s26
    %s29 = sadd.s32 1, %s20
    %s30 = scalar_select %p27, %s29, %s20
    %p31 = scmp.ge.s32.totalorder %s30, 2
    %s32 = scalar_select %p31, 0, %s30
    %s33 = ssub.s32 %s20, %s32
    %s34 = ssub.s32 %s21, %s28
    %s35 = sor.u32 %s33, %s34
    %p36 = scmp.eq.s32.totalorder %s35, 0
    %s38 = sadd.s32 %s37, 1
    %s39 = scalar_select %p36, %s37, %s38
    %p42 = pneg %p36
    %p43 = scmp.eq.s32.totalorder %s13, 1
    %p44 = por %p42, %p43
    %p45 = scmp.ne.s32.totalorder %s37, %s40
    %p46 = scmp.eq.s32.totalorder %s13, 0
    %p47 = por %p45, %p46
    %p48 = scmp.ne.s32.totalorder %s37, %s40
    %p49 = scmp.eq.s32.totalorder %s18, 1
    %p50 = por %p48, %p49
    %p51 = scmp.ne.s32.totalorder %s40, %s41
    %p52 = scmp.eq.s32.totalorder %s18, 0
    %p53 = por %p51, %p52
    %p54 = scmp.ne.s32.totalorder %s40, %s41
    %p55 = scmp.eq.s32.totalorder %s19, 1
    %p56 = por %p54, %p55
    %p58 = scmp.ne.s32.totalorder %s41, %s57
    %p59 = scmp.eq.s32.totalorder %s19, 0
    %p60 = por %p58, %p59
    %s61 = ssub.s32 %s21, %s28
    %p62 = scmp.eq.s32.totalorder %s61, 0
    %s64 = sadd.s32 %s63, 1
    %s65 = scalar_select %p62, %s63, %s64
    %p68 = pneg %p62
    %p69 = scmp.eq.s32.totalorder %s13, 1
    %p70 = por %p68, %p69
    %p71 = scmp.ne.s32.totalorder %s63, %s66
    %p72 = scmp.eq.s32.totalorder %s13, 0
    %p73 = por %p71, %p72
    %p74 = scmp.ne.s32.totalorder %s63, %s66
    %p75 = scmp.eq.s32.totalorder %s18, 1
    %p76 = por %p74, %p75
    %p77 = scmp.ne.s32.totalorder %s66, %s67
    %p78 = scmp.eq.s32.totalorder %s18, 0
    %p79 = por %p77, %p78
    %p80 = scmp.ne.s32.totalorder %s66, %s67
    %p81 = scmp.eq.s32.totalorder %s19, 1
    %p82 = por %p80, %p81
    %p84 = scmp.ne.s32.totalorder %s67, %s83
    %p85 = scmp.eq.s32.totalorder %s19, 0
    %p86 = por %p84, %p85
    %s88 = sadd.s32 %s87, 1
    %p91 = scmp.eq.s32.totalorder %s13, 1
    %p92 = scmp.ne.s32.totalorder %s87, %s89
    %p93 = scmp.eq.s32.totalorder %s13, 0
    %p94 = por %p92, %p93
    %p95 = scmp.ne.s32.totalorder %s87, %s89
    %p96 = scmp.eq.s32.totalorder %s18, 1
    %p97 = por %p95, %p96
    %p98 = scmp.ne.s32.totalorder %s89, %s90
    %p99 = scmp.eq.s32.totalorder %s18, 0
    %p100 = por %p98, %p99
    %p101 = scmp.ne.s32.totalorder %s89, %s90
    %p102 = scmp.eq.s32.totalorder %s19, 1
    %p103 = por %p101, %p102
    %p105 = scmp.ne.s32.totalorder %s90, %s104
    %p106 = scmp.eq.s32.totalorder %s19, 0
    %p107 = por %p105, %p106
    %s109 = sadd.s32 %s108, 1
    %p112 = scmp.eq.s32.totalorder %s13, 1
    %p113 = scmp.ne.s32.totalorder %s108, %s110
    %p114 = scmp.eq.s32.totalorder %s13, 0
    %p115 = por %p113, %p114
    %p116 = scmp.ne.s32.totalorder %s108, %s110
    %p117 = scmp.eq.s32.totalorder %s18, 1
    %p118 = por %p116, %p117
    %p119 = scmp.ne.s32.totalorder %s110, %s111
    %p120 = scmp.eq.s32.totalorder %s18, 0
    %p121 = por %p119, %p120
    %p122 = scmp.ne.s32.totalorder %s110, %s111
    %p123 = scmp.eq.s32.totalorder %s19, 1
    %p124 = por %p122, %p123
    %p126 = scmp.ne.s32.totalorder %s111, %s125
    %p127 = scmp.eq.s32.totalorder %s19, 0
    %p128 = por %p126, %p127
    %s130 = sadd.s32 %s129, 1
    %p133 = scmp.eq.s32.totalorder %s13, 1
    %p134 = scmp.ne.s32.totalorder %s129, %s131
    %p135 = scmp.eq.s32.totalorder %s13, 0
    %p136 = por %p134, %p135
    %p137 = scmp.ne.s32.totalorder %s129, %s131
    %p138 = scmp.eq.s32.totalorder %s18, 1
    %p139 = por %p137, %p138
    %p140 = scmp.ne.s32.totalorder %s131, %s132
    %p141 = scmp.eq.s32.totalorder %s18, 0
    %p142 = por %p140, %p141
    %p143 = scmp.ne.s32.totalorder %s131, %s132
    %p144 = scmp.eq.s32.totalorder %s19, 1
    %p145 = por %p143, %p144
    %p147 = scmp.ne.s32.totalorder %s132, %s146
    %p148 = scmp.eq.s32.totalorder %s19, 0
    %p149 = por %p147, %p148
    %s151 = sadd.s32 %s150, 1
    %p154 = scmp.eq.s32.totalorder %s13, 1
    %p155 = scmp.ne.s32.totalorder %s150, %s152
    %p156 = scmp.eq.s32.totalorder %s13, 0
    %p157 = por %p155, %p156
    %p158 = scmp.ne.s32.totalorder %s150, %s152
    %p159 = scmp.eq.s32.totalorder %s18, 1
    %p160 = por %p158, %p159
    %p161 = scmp.ne.s32.totalorder %s152, %s153
    %p162 = scmp.eq.s32.totalorder %s18, 0
    %p163 = por %p161, %p162
    %p164 = scmp.ne.s32.totalorder %s152, %s153
    %p165 = scmp.eq.s32.totalorder %s19, 1
    %p166 = por %p164, %p165
    %p168 = scmp.ne.s32.totalorder %s153, %s167
    %p169 = scmp.eq.s32.totalorder %s19, 0
    %p170 = por %p168, %p169
    %s172 = sadd.s32 %s171, 1
    %p175 = scmp.eq.s32.totalorder %s13, 1
    %p176 = scmp.ne.s32.totalorder %s171, %s173
    %p177 = scmp.eq.s32.totalorder %s13, 0
    %p178 = por %p176, %p177
    %p179 = scmp.ne.s32.totalorder %s171, %s173
    %p180 = scmp.eq.s32.totalorder %s18, 1
    %p181 = por %p179, %p180
    %p182 = scmp.ne.s32.totalorder %s173, %s174
    %p183 = scmp.eq.s32.totalorder %s18, 0
    %p184 = por %p182, %p183
    %p185 = scmp.ne.s32.totalorder %s173, %s174
    %p186 = scmp.eq.s32.totalorder %s19, 1
    %p187 = por %p185, %p186
    %p189 = scmp.ne.s32.totalorder %s174, %s188
    %p190 = scmp.eq.s32.totalorder %s19, 0
    %p191 = por %p189, %p190
    %s192 = ssub.s32 %s20, %s32
    %s193 = ssub.s32 %s21, %s28
    %s194 = sor.u32 %s192, %s193
    %p195 = scmp.eq.s32.totalorder %s194, 0
    %s197 = sadd.s32 %s196, 1
    %s198 = scalar_select %p195, %s196, %s197
    %p201 = pneg %p195
    %p202 = scmp.eq.s32.totalorder %s13, 1
    %p203 = por %p201, %p202
    %p204 = scmp.ne.s32.totalorder %s196, %s199
    %p205 = scmp.eq.s32.totalorder %s13, 0
    %p206 = por %p204, %p205
    %p207 = scmp.ne.s32.totalorder %s196, %s199
    %p208 = scmp.eq.s32.totalorder %s18, 1
    %p209 = por %p207, %p208
    %p210 = scmp.ne.s32.totalorder %s199, %s200
    %p211 = scmp.eq.s32.totalorder %s18, 0
    %p212 = por %p210, %p211
    %p213 = scmp.ne.s32.totalorder %s199, %s200
    %p214 = scmp.eq.s32.totalorder %s19, 1
    %p215 = por %p213, %p214
    %p217 = scmp.ne.s32.totalorder %s200, %s216
    %p218 = scmp.eq.s32.totalorder %s19, 0
    %p219 = por %p217, %p218
    %p220 = scmp.le.s32.totalorder 1, %s13
    %p221 = scmp.lt.s32.totalorder %s13, 3
    %p222 = pnand %p220, %p221
    %p223 = pneg %p222
    // Predicated region
    $region9: #{decoder_block_forward.1} parent=5 // pred_check
      _
    $region10: #{decoder_block_forward.1} parent=5 // pred_check_branch
      %225 = sbr.rel (%p222) target = $region12
    $region11: #{decoder_block_forward.1} parent=5 // pred_region
      %s226 = ssub.s32 %s13, 1
      // Predicated region
      $region13: #{decoder_block_forward.1} parent=11 // pred_check
        %p227 = pneg %p79
      $region14: #{decoder_block_forward.1} parent=11 // pred_check_branch
        %229 = sbr.rel (%p227) target = $region16
      $region15: #{decoder_block_forward.1} parent=11 // pred_region
        %p230 = scmp.lt.s32.totalorder %s23, 0
        %s231 = scalar_select %p230, %s23, 0
        %s232 = smul.addr %s231, 3
        %s233 = scalar_lea.vmem %s1, %s232
      $region16: #{decoder_block_forward.1} parent=11 // pred_fallthru
        _
      // Predicated region
      $region17: #{decoder_block_forward.1} parent=11 // pred_check
        %p234 = pneg %p100
      $region18: #{decoder_block_forward.1} parent=11 // pred_check_branch
        %236 = sbr.rel (%p234) target = $region20
      $region19: #{decoder_block_forward.1} parent=11 // pred_region
        _
      $region20: #{decoder_block_forward.1} parent=11 // pred_fallthru
        _
      // Predicated region
      $region21: #{decoder_block_forward.1} parent=11 // pred_check
        %p237 = pneg %p121
      $region22: #{decoder_block_forward.1} parent=11 // pred_check_branch
        %239 = sbr.rel (%p237) target = $region24
      $region23: #{decoder_block_forward.1} parent=11 // pred_region
        _
      $region24: #{decoder_block_forward.1} parent=11 // pred_fallthru
        _
      // Predicated region
      $region25: #{decoder_block_forward.1} parent=11 // pred_check
        %p240 = pneg %p142
      $region26: #{decoder_block_forward.1} parent=11 // pred_check_branch
        %242 = sbr.rel (%p240) target = $region28
      $region27: #{decoder_block_forward.1} parent=11 // pred_region
        _
      $region28: #{decoder_block_forward.1} parent=11 // pred_fallthru
        _
      // Predicated region
      $region29: #{decoder_block_forward.1} parent=11 // pred_check
        %p243 = pneg %p163
      $region30: #{decoder_block_forward.1} parent=11 // pred_check_branch
        %245 = sbr.rel (%p243) target = $region32
      $region31: #{decoder_block_forward.1} parent=11 // pred_region
        _
      $region32: #{decoder_block_forward.1} parent=11 // pred_fallthru
        _
      // Predicated region
      $region33: #{decoder_block_forward.1} parent=11 // pred_check
        %p246 = pneg %p184
      $region34: #{decoder_block_forward.1} parent=11 // pred_check_branch
        %248 = sbr.rel (%p246) target = $region36
      $region35: #{decoder_block_forward.1} parent=11 // pred_region
        _
      $region36: #{decoder_block_forward.1} parent=11 // pred_fallthru
        _
    $region12: #{decoder_block_forward.1} parent=5 // pred_fallthru
      _
    %p249 = scmp.lt.s32.totalorder %s13, 2
    // Predicated region
    $region37: #{decoder_block_forward.1} parent=5 // pred_check
      %p250 = pneg %p249
    $region38: #{decoder_block_forward.1} parent=5 // pred_check_branch
      %252 = sbr.rel (%p250) target = $region40
    $region39: #{decoder_block_forward.1} parent=5 // pred_region
      // Predicated region
      $region41: #{decoder_block_forward.1} parent=39 // pred_check
        %p253 = pneg %p47
      $region42: #{decoder_block_forward.1} parent=39 // pred_check_branch
        %255 = sbr.rel (%p253) target = $region44
      $region43: #{decoder_block_forward.1} parent=39 // pred_region
        %p256 = scmp.lt.s32.totalorder %s20, 1
        %s257 = scalar_select %p256, %s20, 1
        %p258 = scmp.lt.s32.totalorder %s21, 0
        %s259 = scalar_select %p258, %s21, 0
        %s260 = smul.addr %s259, 6
        %s261 = smul.addr %s257, 6
        %s262 = sadd.s32 %s260, %s261
        %s263 = smul.addr %s262, 8
        %s264 = scalar_lea.vmem %s0, %s263
      $region44: #{decoder_block_forward.1} parent=39 // pred_fallthru
        _
    $region40: #{decoder_block_forward.1} parent=5 // pred_fallthru
      _
    %p265 = scmp.le.s32.totalorder 1, %s13
    %p266 = scmp.lt.s32.totalorder %s13, 3
    %p267 = pnand %p265, %p266
    %p268 = pneg %p267
    // Predicated region
    $region45: #{decoder_block_forward.1} parent=5 // pred_check
      _
    $region46: #{decoder_block_forward.1} parent=5 // pred_check_branch
      %270 = sbr.rel (%p267) target = $region48
    $region47: #{decoder_block_forward.1} parent=5 // pred_region
      %s271 = ssub.s32 %s13, 1
      %p272 = scmp.lt.s32.totalorder %s22, 1
      %s273 = scalar_select %p272, %s22, 1
      %p274 = scmp.lt.s32.totalorder %s23, 0
      %s275 = scalar_select %p274, %s23, 0
      %s276 = smul.addr %s275, 6
      %s277 = smul.addr %s273, 6
      %s278 = sadd.s32 %s276, %s277
      %s279 = smul.addr %s278, 8
      %s280 = scalar_lea.vmem %s0, %s279
      %p281 = pneg %p53
      %p282 = pneg %p50
      %p283 = scmp.lt.s32.totalorder %s23, 0
      %s284 = scalar_select %p283, %s23, 0
      %s285 = smul.addr %s284, 3
      %s286 = scalar_lea.vmem %s1, %s285
      %p287 = pneg %p79
      %p288 = pneg %p76
      %p289 = pneg %p100
      %p290 = pneg %p97
      %p291 = pneg %p121
      %p292 = pneg %p118
      %p293 = pneg %p142
      %p294 = pneg %p139
      %p295 = pneg %p163
      %p296 = pneg %p160
      %p297 = pneg %p184
      %p298 = pneg %p181
      %p299 = pneg %p212
      %p300 = pneg %p209
      %s301 = smul.u32 2, %s23
      %p302 = scmp.lt.s32.totalorder %s22, 1
      %s303 = scalar_select %p302, %s22, 1
      %p304 = scmp.lt.s32.totalorder %s301, 1
      %s305 = scalar_select %p304, %s301, 1
      %s306 = smul.addr %s303, 2
      %s307 = sadd.s32 %s305, %s306
      %s308 = smul.addr %s307, 8
      %s309 = scalar_lea.vmem %s7, %s308
      %p310 = scmp.lt.s32.totalorder %s22, 1
      %s311 = scalar_select %p310, %s22, 1
      %p312 = scmp.lt.s32.totalorder %s23, 0
      %s313 = scalar_select %p312, %s23, 0
      %s314 = smul.addr %s313, 6
      %s315 = smul.addr %s311, 6
      %s316 = sadd.s32 %s314, %s315
      %s317 = smul.addr %s316, 8
      %s318 = scalar_lea.vmem %s0, %s317
      %p319 = scmp.lt.s32.totalorder %s23, 0
      %s320 = scalar_select %p319, %s23, 0
      %s321 = smul.addr %s320, 3
      %s322 = scalar_lea.vmem %s1, %s321
      %s323 = smul.u32 2, %s23
      %p324 = scmp.lt.s32.totalorder %s22, 1
      %s325 = scalar_select %p324, %s22, 1
      %p326 = scmp.lt.s32.totalorder %s323, 1
      %s327 = scalar_select %p326, %s323, 1
      %s328 = smul.addr %s325, 2
      %s329 = sadd.s32 %s327, %s328
      %s330 = smul.addr %s329, 8
      %s331 = scalar_lea.vmem %s7, %s330
      %s332 = smul.u32 2, %s23
      %v334 = vld [vmem:[%s318] sm:$0xff]
      %v335 = vld [vmem:[%s318 + $0x8] sm:$0xff]
      %v336 = vld [vmem:[%s318 + $0x10] sm:$0xff]
      %v337 = vld [vmem:[%s318 + $0x18] sm:$0xff]
      %v338 = vld [vmem:[%s318 + $0x20] sm:$0xff]
      %v339 = vld [vmem:[%s318 + $0x28] sm:$0xff]
      %v340 = vld [vmem:[%s322] sm:$0x7]
      %v341 = vld [vmem:[%s2] sm:$0x77]
      %v342 = vld [vmem:[%s2 + $0x8] sm:$0x7]
      %v343 = vld [vmem:[%s3] sm:$0xff]
      %v344 = vld [vmem:[%s3 + $0x8] sm:$0xff]
      %vm345 = vcmask 1048064
      %346 = vrot.lane.b32.xlu0 %v334, 64
      %v347 = vpop.permute.xlu0 %346
      %v348 = vsel %vm345, %v347, %v336
      %349 = vrot.lane.b32.xlu0 %v337, 64
      %v350 = vpop.permute.xlu0 %349
      %v351 = vsel %vm345, %v350, %v339
      %352 = vrot.lane.b32.xlu0 %v335, 64
      %v353 = vpop.permute.xlu0 %352
      %354 = vrot.lane.b32.xlu0 %v338, 64
      %v355 = vpop.permute.xlu0 %354
      %356 = vrot.lane.b32.xlu0 %v348, 64
      %v357 = vpop.permute.xlu0 %356
      %358 = vrot.lane.b32.xlu0 %v351, 64
      %v359 = vpop.permute.xlu0 %358
      %v360 = vsel %vm345, %v353, %v347
      %v361 = vsel %vm345, %v355, %v350
      %v362 = vsel %vm345, %v357, %v353
      %v363 = vsel %vm345, %v359, %v355
      %v366 = vlaneseq
      %v367 = vshrl.u32 %v366, 7
      %v368 = vsub.s32 0, %v367
      %v369 = vrot.slane %v341, %v368
      %v370 = vlaneseq
      %v371 = vshrl.u32 %v370, 7
      %v372 = vsub.s32 4, %v371
      %v373 = vrot.slane %v341, %v372
      %v374 = vlaneseq
      %v375 = vshrl.u32 %v374, 7
      %v376 = vsub.s32 0, %v375
      %v377 = vrot.slane %v342, %v376
      %v381 = vlaneseq
      %v382 = vshrl.u32 %v381, 7
      %v383 = vsub.s32 0, %v382
      %v384 = vrot.slane %v369, %v383
      %v385 = vlaneseq
      %v386 = vshrl.u32 %v385, 7
      %v387 = vsub.s32 0, %v386
      %v388 = vrot.slane %v373, %v387
      %v389 = vlaneseq
      %v390 = vshrl.u32 %v389, 7
      %v391 = vsub.s32 0, %v390
      %v392 = vrot.slane %v377, %v391
      %396 = vrot.lane.b32.xlu0 %v384, 47
      %v397 = vpop.permute.xlu0 %396
      %398 = vrot.lane.b32.xlu0 %v388, 47
      %v399 = vpop.permute.xlu0 %398
      %400 = vrot.lane.b32.xlu0 %v392, 47
      %v401 = vpop.permute.xlu0 %400
      %vm402 = vcmask 384000
      %v403 = vsel %vm402, %v397, %v399
      %v404 = vsel %vm402, %v399, %v401
      %v408 = vmul.f32 %v348, %v397
      %v409 = vmul.f32 %v360, %v403
      %v410 = vmul.f32 %v362, %v404
      %v411 = vmul.f32 %v351, %v397
      %v412 = vmul.f32 %v361, %v403
      %v413 = vmul.f32 %v363, %v404
      %v414 = vpack.c.bf16 %v411, %v408
      %v415 = vpack.c.bf16 %v412, %v409
      %v416 = vpack.c.bf16 %v413, %v410
      %v417 = vpack.c.bf16 %v351, %v348
      %v418 = vpack.c.bf16 %v361, %v360
      %v419 = vpack.c.bf16 %v363, %v362
      %v420 = vlaneseq
      %v421 = vshrl.u32 %v420, 7
      %v422 = vsub.s32 2, %v421
      %v423 = vrot.slane %v341, %v422
      %v424 = vlaneseq
      %v425 = vshrl.u32 %v424, 7
      %v426 = vsub.s32 6, %v425
      %v427 = vrot.slane %v341, %v426
      %v428 = vlaneseq
      %v429 = vshrl.u32 %v428, 7
      %v430 = vsub.s32 2, %v429
      %v431 = vrot.slane %v342, %v430
      %v435 = vlaneseq
      %v436 = vshrl.u32 %v435, 7
      %v437 = vsub.s32 2, %v436
      %v438 = vrot.slane %v423, %v437
      %v439 = vlaneseq
      %v440 = vshrl.u32 %v439, 7
      %v441 = vsub.s32 2, %v440
      %v442 = vrot.slane %v427, %v441
      %v443 = vlaneseq
      %v444 = vshrl.u32 %v443, 7
      %v445 = vsub.s32 2, %v444
      %v446 = vrot.slane %v431, %v445
      %450 = vrot.lane.b32.xlu0 %v438, 49
      %v451 = vpop.permute.xlu0 %450
      %452 = vrot.lane.b32.xlu0 %v442, 49
      %v453 = vpop.permute.xlu0 %452
      %454 = vrot.lane.b32.xlu0 %v446, 49
      %v455 = vpop.permute.xlu0 %454
      %vm456 = vcmask 400384
      %v457 = vsel %vm456, %v451, %v453
      %v458 = vsel %vm456, %v453, %v455
      %v462 = vmul.f32 %v348, %v451
      %v463 = vmul.f32 %v360, %v457
      %v464 = vmul.f32 %v362, %v458
      %v465 = vmul.f32 %v351, %v451
      %v466 = vmul.f32 %v361, %v457
      %v467 = vmul.f32 %v363, %v458
      %v468 = vpack.c.bf16 %v465, %v462
      %v469 = vpack.c.bf16 %v466, %v463
      %v470 = vpack.c.bf16 %v467, %v464
      %471 = vrot.lane.b32.xlu0 %v384, 63
      %v472 = vpop.permute.xlu0 %471
      %473 = vrot.lane.b32.xlu0 %v388, 63
      %v474 = vpop.permute.xlu0 %473
      %475 = vrot.lane.b32.xlu0 %v392, 63
      %v476 = vpop.permute.xlu0 %475
      %vm477 = vcmask 515072
      %v478 = vsel %vm477, %v472, %v474
      %v479 = vsel %vm477, %v474, %v476
      %v483 = vmul.f32 %v348, %v472
      %v484 = vmul.f32 %v360, %v478
      %v485 = vmul.f32 %v362, %v479
      %v486 = vmul.f32 %v351, %v472
      %v487 = vmul.f32 %v361, %v478
      %v488 = vmul.f32 %v363, %v479
      %v489 = vpack.c.bf16 %v486, %v483
      %v490 = vpack.c.bf16 %v487, %v484
      %v491 = vpack.c.bf16 %v488, %v485
      %v492 = vpack.c.bf16 %v337, %v334
      %v493 = vpack.c.bf16 %v338, %v335
      %v494 = vpack.c.bf16 %v339, %v336
      %495 = vrot.lane.b32.xlu0 %v438, 1
      %v496 = vpop.permute.xlu0 %495
      %497 = vrot.lane.b32.xlu0 %v442, 1
      %v498 = vpop.permute.xlu0 %497
      %499 = vrot.lane.b32.xlu0 %v446, 1
      %v500 = vpop.permute.xlu0 %499
      %vm501 = vcmask 7168
      %v502 = vsel %vm501, %v496, %v498
      %v503 = vsel %vm501, %v498, %v500
      %v507 = vmul.f32 %v334, %v496
      %v508 = vmul.f32 %v335, %v502
      %v509 = vmul.f32 %v348, %v503
      %v510 = vmul.f32 %v337, %v496
      %v511 = vmul.f32 %v338, %v502
      %v512 = vmul.f32 %v351, %v503
      %v513 = vpack.c.bf16 %v510, %v507
      %v514 = vpack.c.bf16 %v511, %v508
      %v515 = vpack.c.bf16 %v512, %v509
      %516 = vrot.lane.b32.xlu0 %v384, 15
      %v517 = vpop.permute.xlu0 %516
      %518 = vrot.lane.b32.xlu0 %v388, 15
      %v519 = vpop.permute.xlu0 %518
      %520 = vrot.lane.b32.xlu0 %v392, 15
      %v521 = vpop.permute.xlu0 %520
      %vm522 = vcmask 121856
      %v523 = vsel %vm522, %v517, %v519
      %v524 = vsel %vm522, %v519, %v521
      %v528 = vmul.f32 %v334, %v517
      %v529 = vmul.f32 %v335, %v523
      %v530 = vmul.f32 %v348, %v524
      %v531 = vmul.f32 %v337, %v517
      %v532 = vmul.f32 %v338, %v523
      %v533 = vmul.f32 %v351, %v524
      %v534 = vpack.c.bf16 %v531, %v528
      %v535 = vpack.c.bf16 %v532, %v529
      %v536 = vpack.c.bf16 %v533, %v530
      %537 = vrot.lane.b32.xlu0 %v438, 17
      %v538 = vpop.permute.xlu0 %537
      %539 = vrot.lane.b32.xlu0 %v442, 17
      %v540 = vpop.permute.xlu0 %539
      %541 = vrot.lane.b32.xlu0 %v446, 17
      %v542 = vpop.permute.xlu0 %541
      %vm543 = vcmask 138240
      %v544 = vsel %vm543, %v538, %v540
      %v545 = vsel %vm543, %v540, %v542
      %v549 = vmul.f32 %v334, %v538
      %v550 = vmul.f32 %v335, %v544
      %v551 = vmul.f32 %v348, %v545
      %v552 = vmul.f32 %v337, %v538
      %v553 = vmul.f32 %v338, %v544
      %v554 = vmul.f32 %v351, %v545
      %v555 = vpack.c.bf16 %v552, %v549
      %v556 = vpack.c.bf16 %v553, %v550
      %v557 = vpack.c.bf16 %v554, %v551
      %561 = vrot.lane.b32.xlu0 %v417, 127
      %v562 = vpop.permute.xlu0 %561
      %563 = vrot.lane.b32.xlu0 %v418, 127
      %v564 = vpop.permute.xlu0 %563
      %565 = vrot.lane.b32.xlu0 %v419, 127
      %v566 = vpop.permute.xlu0 %565
      %vm567 = vcmask 1039360
      %v568 = vsel %vm567, %v562, %v564
      %v569 = vsel %vm567, %v564, %v566
      %573 = vrot.lane.b32.xlu0 %v468, 126
      %v574 = vpop.permute.xlu0 %573
      %575 = vrot.lane.b32.xlu0 %v469, 126
      %v576 = vpop.permute.xlu0 %575
      %577 = vrot.lane.b32.xlu0 %v470, 126
      %v578 = vpop.permute.xlu0 %577
      %vm579 = vcmask 1031168
      %v580 = vsel %vm579, %v574, %v576
      %v581 = vsel %vm579, %v576, %v578
      %585 = vrot.lane.b32.xlu0 %v489, 112
      %v586 = vpop.permute.xlu0 %585
      %587 = vrot.lane.b32.xlu0 %v490, 112
      %v588 = vpop.permute.xlu0 %587
      %589 = vrot.lane.b32.xlu0 %v491, 112
      %v590 = vpop.permute.xlu0 %589
      %vm591 = vcmask 916480
      %v592 = vsel %vm591, %v586, %v588
      %v593 = vsel %vm591, %v588, %v590
      %597 = vrot.lane.b32.xlu0 %v492, 47
      %v598 = vpop.permute.xlu0 %597
      %599 = vrot.lane.b32.xlu0 %v493, 47
      %v600 = vpop.permute.xlu0 %599
      %601 = vrot.lane.b32.xlu0 %v494, 47
      %v602 = vpop.permute.xlu0 %601
      %vm603 = vcmask 384000
      %v604 = vsel %vm603, %v598, %v600
      %v605 = vsel %vm603, %v600, %v602
      %609 = vrot.lane.b32.xlu0 %v513, 46
      %v610 = vpop.permute.xlu0 %609
      %611 = vrot.lane.b32.xlu0 %v514, 46
      %v612 = vpop.permute.xlu0 %611
      %613 = vrot.lane.b32.xlu0 %v515, 46
      %v614 = vpop.permute.xlu0 %613
      %vm615 = vcmask 375808
      %v616 = vsel %vm615, %v610, %v612
      %v617 = vsel %vm615, %v612, %v614
      %621 = vrot.lane.b32.xlu0 %v534, 32
      %v622 = vpop.permute.xlu0 %621
      %623 = vrot.lane.b32.xlu0 %v535, 32
      %v624 = vpop.permute.xlu0 %623
      %625 = vrot.lane.b32.xlu0 %v536, 32
      %v626 = vpop.permute.xlu0 %625
      %vm627 = vcmask 261120
      %v628 = vsel %vm627, %v622, %v624
      %v629 = vsel %vm627, %v624, %v626
      %630 = vrot.lane.b32.xlu0 %v492, 31
      %v631 = vpop.permute.xlu0 %630
      %632 = vrot.lane.b32.xlu0 %v493, 31
      %v633 = vpop.permute.xlu0 %632
      %634 = vrot.lane.b32.xlu0 %v417, 31
      %v635 = vpop.permute.xlu0 %634
      %vm636 = vcmask 252928
      %v637 = vsel %vm636, %v631, %v633
      %v638 = vsel %vm636, %v633, %v635
      %642 = vrot.lane.b32.xlu0 %v555, 30
      %v643 = vpop.permute.xlu0 %642
      %644 = vrot.lane.b32.xlu0 %v556, 30
      %v645 = vpop.permute.xlu0 %644
      %646 = vrot.lane.b32.xlu0 %v557, 30
      %v647 = vpop.permute.xlu0 %646
      %vm648 = vcmask 244736
      %v649 = vsel %vm648, %v643, %v645
      %v650 = vsel %vm648, %v645, %v647
      %v651 = vld [vmem:[%s5] sm:$0xff]
      %v652 = vld [vmem:[%s5 + $0x8] sm:$0xff]
      %654 = vset.pattern.permute.xlu0 0
      %655 = vperm.xlu0 %654, %v651
      %v656 = vpop.permute.xlu0 %655
      %659 = vset.pattern.permute.xlu0 0
      %660 = vperm.xlu0 %659, %v652
      %v661 = vpop.permute.xlu0 %660
      %v665 = vunpack.c.l.b16 %v343
      %v666 = vunpack.c.h.b16 %v343
      %v667 = vunpack.c.l.b16 %v344
      %v668 = vunpack.c.h.b16 %v344
      %v669 = vpack.c.b16 %v667, %v665
      %v670 = vpack.c.b16 %v668, %v666
      %675 = vrot.lane.b32.xlu0 %v414, 81
      %v676 = vpop.permute.xlu0 %675
      %677 = vrot.lane.b32.xlu0 %v415, 81
      %v678 = vpop.permute.xlu0 %677
      %679 = vrot.lane.b32.xlu0 %v416, 81
      %v680 = vpop.permute.xlu0 %679
      %681 = vrot.lane.b32.xlu0 %v568, 81
      %v682 = vpop.permute.xlu0 %681
      %683 = vrot.lane.b32.xlu0 %v569, 81
      %v684 = vpop.permute.xlu0 %683
      %685 = vrot.lane.b32.xlu0 %v566, 81
      %v686 = vpop.permute.xlu0 %685
      %687 = vrot.lane.b32.xlu0 %v580, 81
      %v688 = vpop.permute.xlu0 %687
      %689 = vrot.lane.b32.xlu0 %v581, 81
      %v690 = vpop.permute.xlu0 %689
      %691 = vrot.lane.b32.xlu0 %v578, 81
      %v692 = vpop.permute.xlu0 %691
      %693 = vrot.lane.b32.xlu0 %v592, 81
      %v694 = vpop.permute.xlu0 %693
      %695 = vrot.lane.b32.xlu0 %v593, 81
      %v696 = vpop.permute.xlu0 %695
      %697 = vrot.lane.b32.xlu0 %v590, 81
      %v698 = vpop.permute.xlu0 %697
      %699 = vrot.lane.b32.xlu0 %v598, 81
      %v700 = vpop.permute.xlu0 %699
      %701 = vrot.lane.b32.xlu0 %v604, 81
      %v702 = vpop.permute.xlu0 %701
      %703 = vrot.lane.b32.xlu0 %v605, 81
      %v704 = vpop.permute.xlu0 %703
      %705 = vrot.lane.b32.xlu0 %v610, 81
      %v706 = vpop.permute.xlu0 %705
      %707 = vrot.lane.b32.xlu0 %v616, 81
      %v708 = vpop.permute.xlu0 %707
      %709 = vrot.lane.b32.xlu0 %v617, 81
      %v710 = vpop.permute.xlu0 %709
      %711 = vrot.lane.b32.xlu0 %v622, 81
      %v712 = vpop.permute.xlu0 %711
      %713 = vrot.lane.b32.xlu0 %v628, 81
      %v714 = vpop.permute.xlu0 %713
      %715 = vrot.lane.b32.xlu0 %v629, 81
      %v716 = vpop.permute.xlu0 %715
      %717 = vrot.lane.b32.xlu0 %v631, 81
      %v718 = vpop.permute.xlu0 %717
      %719 = vrot.lane.b32.xlu0 %v637, 81
      %v720 = vpop.permute.xlu0 %719
      %721 = vrot.lane.b32.xlu0 %v638, 81
      %v722 = vpop.permute.xlu0 %721
      %723 = vrot.lane.b32.xlu0 %v643, 81
      %v724 = vpop.permute.xlu0 %723
      %725 = vrot.lane.b32.xlu0 %v649, 81
      %v726 = vpop.permute.xlu0 %725
      %727 = vrot.lane.b32.xlu0 %v650, 81
      %v728 = vpop.permute.xlu0 %727
      %vm729 = vcmask 662528
      %v730 = vsel %vm729, %v676, %v678
      %v731 = vsel %vm729, %v678, %v680
      %v732 = vsel %vm729, %v682, %v684
      %v733 = vsel %vm729, %v684, %v686
      %v734 = vsel %vm729, %v688, %v690
      %v735 = vsel %vm729, %v690, %v692
      %v736 = vsel %vm729, %v694, %v696
      %v737 = vsel %vm729, %v696, %v698
      %v738 = vsel %vm729, %v700, %v702
      %v739 = vsel %vm729, %v702, %v704
      %v740 = vsel %vm729, %v706, %v708
      %v741 = vsel %vm729, %v708, %v710
      %v742 = vsel %vm729, %v712, %v714
      %v743 = vsel %vm729, %v714, %v716
      %v744 = vsel %vm729, %v718, %v720
      %v745 = vsel %vm729, %v720, %v722
      %v746 = vsel %vm729, %v724, %v726
      %v747 = vsel %vm729, %v726, %v728
      %vm775 = vcmask 130048
      %v777 = vsel %vm775, %v670, 0
      %779 = vmatprep.subr.bf16.mxu0 %v731
      %780 = vmatpush1.bf16.msra.mxu0 %v730
      %781 = vmatprep.subr.bf16.mxu0 %v733
      %782 = vmatpush1.bf16.msra.mxu0 %v732
      %783 = vmatprep.subr.bf16.mxu0 %v735
      %784 = vmatpush1.bf16.msra.mxu0 %v734
      %785 = vmatprep.subr.bf16.mxu0 %v737
      %786 = vmatpush1.bf16.msra.mxu0 %v736
      %787 = vmatprep.subr.bf16.mxu0 %v739
      %788 = vmatpush1.bf16.msra.mxu0 %v738
      %789 = vmatprep.subr.bf16.mxu0 %v741
      %790 = vmatpush1.bf16.msra.mxu0 %v740
      %791 = vmatprep.subr.bf16.mxu0 %v743
      %792 = vmatpush1.bf16.msra.mxu0 %v742
      %793 = vmatprep.subr.bf16.mxu0 %v745
      %794 = vmatpush1.bf16.msra.mxu0 %v744
      %795 = vmatprep.subr.bf16.mxu0 %v747
      %796 = vmatpush1.bf16.msra.mxu0 %v746
      %797 = vmatprep.subr.bf16.mxu0 0
      %798 = vmatpush1.bf16.msra.mxu0 0
      %799 = vmatprep.subr.bf16.mxu0 0
      %800 = vmatpush1.bf16.msra.mxu0 0
      %801 = vmatprep.subr.bf16.mxu0 0
      %802 = vmatpush1.bf16.msra.mxu0 0
      %803 = vmatprep.subr.bf16.mxu0 0
      %804 = vmatpush1.bf16.msra.mxu0 0
      %805 = vmatprep.subr.bf16.mxu0 0
      %806 = vmatpush1.bf16.msra.mxu0 0
      %807 = vmatprep.subr.bf16.mxu0 0
      %808 = vmatpush1.bf16.msra.mxu0 0
      %809 = vmatprep.subr.bf16.mxu0 0
      %810 = vmatpush1.bf16.msra.mxu0 0
      %811 = vmatprep.mubr.bf16.mxu0 %v777
      %812 = vmatmul.mubr.bf16.gmra.mrb[0].mxu0 %v669
      %v813 = vpop.f32.mrb[0].mxu0
      %v814 = vadd.f32 %v656, %v813
      %v815 = vpop.f32.mrb[0].mxu0
      %v816 = vadd.f32 %v656, %v815
      %v817 = vpop.f32.mrb[0].mxu0
      %v818 = vadd.f32 %v661, %v817
      %v819 = vpop.f32.mrb[0].mxu0
      %v820 = vadd.f32 %v661, %v819
      %821 = vdwg.mxu0
      %822 = vmatprep.subr.bf16.mxu0 0
      %823 = vmatpush1.bf16.msra.mxu0 %v680
      %824 = vmatprep.subr.bf16.mxu0 0
      %825 = vmatpush1.bf16.msra.mxu0 %v686
      %826 = vmatprep.subr.bf16.mxu0 0
      %827 = vmatpush1.bf16.msra.mxu0 %v692
      %828 = vmatprep.subr.bf16.mxu0 0
      %829 = vmatpush1.bf16.msra.mxu0 %v698
      %830 = vmatprep.subr.bf16.mxu0 0
      %831 = vmatpush1.bf16.msra.mxu0 %v704
      %832 = vmatprep.subr.bf16.mxu0 0
      %833 = vmatpush1.bf16.msra.mxu0 %v710
      %834 = vmatprep.subr.bf16.mxu0 0
      %835 = vmatpush1.bf16.msra.mxu0 %v716
      %836 = vmatprep.subr.bf16.mxu0 0
      %837 = vmatpush1.bf16.msra.mxu0 %v722
      %838 = vmatprep.subr.bf16.mxu0 0
      %839 = vmatpush1.bf16.msra.mxu0 %v728
      %840 = vmatprep.subr.bf16.mxu0 0
      %841 = vmatpush1.bf16.msra.mxu0 0
      %842 = vmatprep.subr.bf16.mxu0 0
      %843 = vmatpush1.bf16.msra.mxu0 0
      %844 = vmatprep.subr.bf16.mxu0 0
      %845 = vmatpush1.bf16.msra.mxu0 0
      %846 = vmatprep.subr.bf16.mxu0 0
      %847 = vmatpush1.bf16.msra.mxu0 0
      %848 = vmatprep.subr.bf16.mxu0 0
      %849 = vmatpush1.bf16.msra.mxu0 0
      %850 = vmatprep.subr.bf16.mxu0 0
      %851 = vmatpush1.bf16.msra.mxu0 0
      %852 = vmatprep.subr.bf16.mxu0 0
      %853 = vmatpush1.bf16.msra.mxu0 0
      %854 = vmatprep.mubr.bf16.mxu0 %v777
      %855 = vmatmul.mubr.bf16.gmra.mrb[0].mxu0 %v669
      %v856 = vpop.f32.mrb[0].mxu0
      %v857 = vadd.f32 %v656, %v856
      %v858 = vpop.f32.mrb[0].mxu0
      %v859 = vpop.f32.mrb[0].mxu0
      %v860 = vadd.f32 %v661, %v859
      %v861 = vpop.f32.mrb[0].mxu0
      %862 = vdwg.mxu0
      %v863 = vmax.f32 %v814, 0.0
      %v864 = vmax.f32 %v816, 0.0
      %v865 = vmax.f32 %v857, 0.0
      %v866 = vmax.f32 %v818, 0.0
      %v867 = vmax.f32 %v820, 0.0
      %v868 = vmax.f32 %v860, 0.0
      %v870 = vlaneseq
      %v871 = vshrl.u32 %v870, 7
      %v872 = vsub.s32 0, %v871
      %v873 = vrot.slane %v340, %v872
      %v874 = vlaneseq
      %v875 = vshrl.u32 %v874, 7
      %v876 = vsub.s32 1, %v875
      %v877 = vrot.slane %v340, %v876
      %v878 = vlaneseq
      %v879 = vshrl.u32 %v878, 7
      %v880 = vsub.s32 2, %v879
      %v881 = vrot.slane %v340, %v880
      %v885 = vmul.f32 %v863, %v873
      %v886 = vmul.f32 %v864, %v877
      %v887 = vmul.f32 %v865, %v881
      %v888 = vmul.f32 %v866, %v873
      %v889 = vmul.f32 %v867, %v877
      %v890 = vmul.f32 %v868, %v881
      %v891 = vld [vmem:[%s4] sm:$0xff]
      %v892 = vld [vmem:[%s4 + $0x8] sm:$0xff]
      %893 = vrot.lane.b32.xlu0 %v885, 64
      %v894 = vpop.permute.xlu0 %893
      %v895 = vsel %vm345, %v894, %v887
      %896 = vrot.lane.b32.xlu0 %v888, 64
      %v897 = vpop.permute.xlu0 %896
      %v898 = vsel %vm345, %v897, %v890
      %899 = vrot.lane.b32.xlu0 %v886, 64
      %v900 = vpop.permute.xlu0 %899
      %901 = vrot.lane.b32.xlu0 %v889, 64
      %v902 = vpop.permute.xlu0 %901
      %903 = vrot.lane.b32.xlu0 %v895, 64
      %v904 = vpop.permute.xlu0 %903
      %905 = vrot.lane.b32.xlu0 %v898, 64
      %v906 = vpop.permute.xlu0 %905
      %v907 = vsel %vm345, %v900, %v894
      %v908 = vsel %vm345, %v902, %v897
      %v909 = vsel %vm345, %v904, %v900
      %v910 = vsel %vm345, %v906, %v902
      %v911 = vmul.f32 %v895, %v397
      %v912 = vmul.f32 %v907, %v403
      %v913 = vmul.f32 %v909, %v404
      %v914 = vmul.f32 %v898, %v397
      %v915 = vmul.f32 %v908, %v403
      %v916 = vmul.f32 %v910, %v404
      %v917 = vpack.c.bf16 %v914, %v911
      %v918 = vpack.c.bf16 %v915, %v912
      %v919 = vpack.c.bf16 %v916, %v913
      %v920 = vpack.c.bf16 %v898, %v895
      %v921 = vpack.c.bf16 %v908, %v907
      %v922 = vpack.c.bf16 %v910, %v909
      %v923 = vmul.f32 %v895, %v451
      %v924 = vmul.f32 %v907, %v457
      %v925 = vmul.f32 %v909, %v458
      %v926 = vmul.f32 %v898, %v451
      %v927 = vmul.f32 %v908, %v457
      %v928 = vmul.f32 %v910, %v458
      %v929 = vpack.c.bf16 %v926, %v923
      %v930 = vpack.c.bf16 %v927, %v924
      %v931 = vpack.c.bf16 %v928, %v925
      %v932 = vmul.f32 %v895, %v472
      %v933 = vmul.f32 %v907, %v478
      %v934 = vmul.f32 %v909, %v479
      %v935 = vmul.f32 %v898, %v472
      %v936 = vmul.f32 %v908, %v478
      %v937 = vmul.f32 %v910, %v479
      %v938 = vpack.c.bf16 %v935, %v932
      %v939 = vpack.c.bf16 %v936, %v933
      %v940 = vpack.c.bf16 %v937, %v934
      %v941 = vpack.c.bf16 %v888, %v885
      %v942 = vpack.c.bf16 %v889, %v886
      %v943 = vpack.c.bf16 %v890, %v887
      %v944 = vmul.f32 %v885, %v496
      %v945 = vmul.f32 %v886, %v502
      %v946 = vmul.f32 %v895, %v503
      %v947 = vmul.f32 %v888, %v496
      %v948 = vmul.f32 %v889, %v502
      %v949 = vmul.f32 %v898, %v503
      %v950 = vpack.c.bf16 %v947, %v944
      %v951 = vpack.c.bf16 %v948, %v945
      %v952 = vpack.c.bf16 %v949, %v946
      %v953 = vmul.f32 %v885, %v517
      %v954 = vmul.f32 %v886, %v523
      %v955 = vmul.f32 %v895, %v524
      %v956 = vmul.f32 %v888, %v517
      %v957 = vmul.f32 %v889, %v523
      %v958 = vmul.f32 %v898, %v524
      %v959 = vpack.c.bf16 %v956, %v953
      %v960 = vpack.c.bf16 %v957, %v954
      %v961 = vpack.c.bf16 %v958, %v955
      %v962 = vmul.f32 %v885, %v538
      %v963 = vmul.f32 %v886, %v544
      %v964 = vmul.f32 %v895, %v545
      %v965 = vmul.f32 %v888, %v538
      %v966 = vmul.f32 %v889, %v544
      %v967 = vmul.f32 %v898, %v545
      %v968 = vpack.c.bf16 %v965, %v962
      %v969 = vpack.c.bf16 %v966, %v963
      %v970 = vpack.c.bf16 %v967, %v964
      %974 = vrot.lane.b32.xlu0 %v920, 127
      %v975 = vpop.permute.xlu0 %974
      %976 = vrot.lane.b32.xlu0 %v921, 127
      %v977 = vpop.permute.xlu0 %976
      %978 = vrot.lane.b32.xlu0 %v922, 127
      %v979 = vpop.permute.xlu0 %978
      %v980 = vsel %vm567, %v975, %v977
      %v981 = vsel %vm567, %v977, %v979
      %985 = vrot.lane.b32.xlu0 %v929, 126
      %v986 = vpop.permute.xlu0 %985
      %987 = vrot.lane.b32.xlu0 %v930, 126
      %v988 = vpop.permute.xlu0 %987
      %989 = vrot.lane.b32.xlu0 %v931, 126
      %v990 = vpop.permute.xlu0 %989
      %v991 = vsel %vm579, %v986, %v988
      %v992 = vsel %vm579, %v988, %v990
      %996 = vrot.lane.b32.xlu0 %v938, 112
      %v997 = vpop.permute.xlu0 %996
      %998 = vrot.lane.b32.xlu0 %v939, 112
      %v999 = vpop.permute.xlu0 %998
      %1000 = vrot.lane.b32.xlu0 %v940, 112
      %v1001 = vpop.permute.xlu0 %1000
      %v1002 = vsel %vm591, %v997, %v999
      %v1003 = vsel %vm591, %v999, %v1001
      %1007 = vrot.lane.b32.xlu0 %v941, 47
      %v1008 = vpop.permute.xlu0 %1007
      %1009 = vrot.lane.b32.xlu0 %v942, 47
      %v1010 = vpop.permute.xlu0 %1009
      %1011 = vrot.lane.b32.xlu0 %v943, 47
      %v1012 = vpop.permute.xlu0 %1011
      %v1013 = vsel %vm603, %v1008, %v1010
      %v1014 = vsel %vm603, %v1010, %v1012
      %1018 = vrot.lane.b32.xlu0 %v950, 46
      %v1019 = vpop.permute.xlu0 %1018
      %1020 = vrot.lane.b32.xlu0 %v951, 46
      %v1021 = vpop.permute.xlu0 %1020
      %1022 = vrot.lane.b32.xlu0 %v952, 46
      %v1023 = vpop.permute.xlu0 %1022
      %v1024 = vsel %vm615, %v1019, %v1021
      %v1025 = vsel %vm615, %v1021, %v1023
      %1029 = vrot.lane.b32.xlu0 %v959, 32
      %v1030 = vpop.permute.xlu0 %1029
      %1031 = vrot.lane.b32.xlu0 %v960, 32
      %v1032 = vpop.permute.xlu0 %1031
      %1033 = vrot.lane.b32.xlu0 %v961, 32
      %v1034 = vpop.permute.xlu0 %1033
      %v1035 = vsel %vm627, %v1030, %v1032
      %v1036 = vsel %vm627, %v1032, %v1034
      %1037 = vrot.lane.b32.xlu0 %v941, 31
      %v1038 = vpop.permute.xlu0 %1037
      %1039 = vrot.lane.b32.xlu0 %v942, 31
      %v1040 = vpop.permute.xlu0 %1039
      %1041 = vrot.lane.b32.xlu0 %v920, 31
      %v1042 = vpop.permute.xlu0 %1041
      %v1043 = vsel %vm636, %v1038, %v1040
      %v1044 = vsel %vm636, %v1040, %v1042
      %1048 = vrot.lane.b32.xlu0 %v968, 30
      %v1049 = vpop.permute.xlu0 %1048
      %1050 = vrot.lane.b32.xlu0 %v969, 30
      %v1051 = vpop.permute.xlu0 %1050
      %1052 = vrot.lane.b32.xlu0 %v970, 30
      %v1053 = vpop.permute.xlu0 %1052
      %v1054 = vsel %vm648, %v1049, %v1051
      %v1055 = vsel %vm648, %v1051, %v1053
      %v1056 = vld [vmem:[%s6] sm:$0xff]
      %v1057 = vld [vmem:[%s6 + $0x8] sm:$0xff]
      %1059 = vset.pattern.permute.xlu0 0
      %1060 = vperm.xlu0 %1059, %v1056
      %v1061 = vpop.permute.xlu0 %1060
      %1064 = vset.pattern.permute.xlu0 0
      %1065 = vperm.xlu0 %1064, %v1057
      %v1066 = vpop.permute.xlu0 %1065
      %v1069 = vunpack.c.l.b16 %v891
      %v1070 = vunpack.c.h.b16 %v891
      %v1071 = vunpack.c.l.b16 %v892
      %v1072 = vunpack.c.h.b16 %v892
      %v1073 = vpack.c.b16 %v1071, %v1069
      %v1074 = vpack.c.b16 %v1072, %v1070
      %1079 = vrot.lane.b32.xlu0 %v917, 81
      %v1080 = vpop.permute.xlu0 %1079
      %1081 = vrot.lane.b32.xlu0 %v918, 81
      %v1082 = vpop.permute.xlu0 %1081
      %1083 = vrot.lane.b32.xlu0 %v919, 81
      %v1084 = vpop.permute.xlu0 %1083
      %1085 = vrot.lane.b32.xlu0 %v980, 81
      %v1086 = vpop.permute.xlu0 %1085
      %1087 = vrot.lane.b32.xlu0 %v981, 81
      %v1088 = vpop.permute.xlu0 %1087
      %1089 = vrot.lane.b32.xlu0 %v979, 81
      %v1090 = vpop.permute.xlu0 %1089
      %1091 = vrot.lane.b32.xlu0 %v991, 81
      %v1092 = vpop.permute.xlu0 %1091
      %1093 = vrot.lane.b32.xlu0 %v992, 81
      %v1094 = vpop.permute.xlu0 %1093
      %1095 = vrot.lane.b32.xlu0 %v990, 81
      %v1096 = vpop.permute.xlu0 %1095
      %1097 = vrot.lane.b32.xlu0 %v1002, 81
      %v1098 = vpop.permute.xlu0 %1097
      %1099 = vrot.lane.b32.xlu0 %v1003, 81
      %v1100 = vpop.permute.xlu0 %1099
      %1101 = vrot.lane.b32.xlu0 %v1001, 81
      %v1102 = vpop.permute.xlu0 %1101
      %1103 = vrot.lane.b32.xlu0 %v1008, 81
      %v1104 = vpop.permute.xlu0 %1103
      %1105 = vrot.lane.b32.xlu0 %v1013, 81
      %v1106 = vpop.permute.xlu0 %1105
      %1107 = vrot.lane.b32.xlu0 %v1014, 81
      %v1108 = vpop.permute.xlu0 %1107
      %1109 = vrot.lane.b32.xlu0 %v1019, 81
      %v1110 = vpop.permute.xlu0 %1109
      %1111 = vrot.lane.b32.xlu0 %v1024, 81
      %v1112 = vpop.permute.xlu0 %1111
      %1113 = vrot.lane.b32.xlu0 %v1025, 81
      %v1114 = vpop.permute.xlu0 %1113
      %1115 = vrot.lane.b32.xlu0 %v1030, 81
      %v1116 = vpop.permute.xlu0 %1115
      %1117 = vrot.lane.b32.xlu0 %v1035, 81
      %v1118 = vpop.permute.xlu0 %1117
      %1119 = vrot.lane.b32.xlu0 %v1036, 81
      %v1120 = vpop.permute.xlu0 %1119
      %1121 = vrot.lane.b32.xlu0 %v1038, 81
      %v1122 = vpop.permute.xlu0 %1121
      %1123 = vrot.lane.b32.xlu0 %v1043, 81
      %v1124 = vpop.permute.xlu0 %1123
      %1125 = vrot.lane.b32.xlu0 %v1044, 81
      %v1126 = vpop.permute.xlu0 %1125
      %1127 = vrot.lane.b32.xlu0 %v1049, 81
      %v1128 = vpop.permute.xlu0 %1127
      %1129 = vrot.lane.b32.xlu0 %v1054, 81
      %v1130 = vpop.permute.xlu0 %1129
      %1131 = vrot.lane.b32.xlu0 %v1055, 81
      %v1132 = vpop.permute.xlu0 %1131
      %v1133 = vsel %vm729, %v1080, %v1082
      %v1134 = vsel %vm729, %v1082, %v1084
      %v1135 = vsel %vm729, %v1086, %v1088
      %v1136 = vsel %vm729, %v1088, %v1090
      %v1137 = vsel %vm729, %v1092, %v1094
      %v1138 = vsel %vm729, %v1094, %v1096
      %v1139 = vsel %vm729, %v1098, %v1100
      %v1140 = vsel %vm729, %v1100, %v1102
      %v1141 = vsel %vm729, %v1104, %v1106
      %v1142 = vsel %vm729, %v1106, %v1108
      %v1143 = vsel %vm729, %v1110, %v1112
      %v1144 = vsel %vm729, %v1112, %v1114
      %v1145 = vsel %vm729, %v1116, %v1118
      %v1146 = vsel %vm729, %v1118, %v1120
      %v1147 = vsel %vm729, %v1122, %v1124
      %v1148 = vsel %vm729, %v1124, %v1126
      %v1149 = vsel %vm729, %v1128, %v1130
      %v1150 = vsel %vm729, %v1130, %v1132
      %v1179 = vsel %vm775, %v1074, 0
      %1181 = vmatprep.subr.bf16.mxu0 %v1134
      %1182 = vmatpush1.bf16.msra.mxu0 %v1133
      %1183 = vmatprep.subr.bf16.mxu0 %v1136
      %1184 = vmatpush1.bf16.msra.mxu0 %v1135
      %1185 = vmatprep.subr.bf16.mxu0 %v1138
      %1186 = vmatpush1.bf16.msra.mxu0 %v1137
      %1187 = vmatprep.subr.bf16.mxu0 %v1140
      %1188 = vmatpush1.bf16.msra.mxu0 %v1139
      %1189 = vmatprep.subr.bf16.mxu0 %v1142
      %1190 = vmatpush1.bf16.msra.mxu0 %v1141
      %1191 = vmatprep.subr.bf16.mxu0 %v1144
      %1192 = vmatpush1.bf16.msra.mxu0 %v1143
      %1193 = vmatprep.subr.bf16.mxu0 %v1146
      %1194 = vmatpush1.bf16.msra.mxu0 %v1145
      %1195 = vmatprep.subr.bf16.mxu0 %v1148
      %1196 = vmatpush1.bf16.msra.mxu0 %v1147
      %1197 = vmatprep.subr.bf16.mxu0 %v1150
      %1198 = vmatpush1.bf16.msra.mxu0 %v1149
      %1199 = vmatprep.subr.bf16.mxu0 0
      %1200 = vmatpush1.bf16.msra.mxu0 0
      %1201 = vmatprep.subr.bf16.mxu0 0
      %1202 = vmatpush1.bf16.msra.mxu0 0
      %1203 = vmatprep.subr.bf16.mxu0 0
      %1204 = vmatpush1.bf16.msra.mxu0 0
      %1205 = vmatprep.subr.bf16.mxu0 0
      %1206 = vmatpush1.bf16.msra.mxu0 0
      %1207 = vmatprep.subr.bf16.mxu0 0
      %1208 = vmatpush1.bf16.msra.mxu0 0
      %1209 = vmatprep.subr.bf16.mxu0 0
      %1210 = vmatpush1.bf16.msra.mxu0 0
      %1211 = vmatprep.subr.bf16.mxu0 0
      %1212 = vmatpush1.bf16.msra.mxu0 0
      %1213 = vmatprep.mubr.bf16.mxu0 %v1179
      %1214 = vmatmul.mubr.bf16.gmra.mrb[0].mxu0 %v1073
      %v1215 = vpop.f32.mrb[0].mxu0
      %v1216 = vadd.f32 %v1061, %v1215
      %v1217 = vpop.f32.mrb[0].mxu0
      %v1218 = vadd.f32 %v1061, %v1217
      %v1219 = vpop.f32.mrb[0].mxu0
      %v1220 = vpop.f32.mrb[0].mxu0
      %1221 = vdwg.mxu0
      %1222 = vmatprep.subr.bf16.mxu0 0
      %1223 = vmatpush1.bf16.msra.mxu0 %v1084
      %1224 = vmatprep.subr.bf16.mxu0 0
      %1225 = vmatpush1.bf16.msra.mxu0 %v1090
      %1226 = vmatprep.subr.bf16.mxu0 0
      %1227 = vmatpush1.bf16.msra.mxu0 %v1096
      %1228 = vmatprep.subr.bf16.mxu0 0
      %1229 = vmatpush1.bf16.msra.mxu0 %v1102
      %1230 = vmatprep.subr.bf16.mxu0 0
      %1231 = vmatpush1.bf16.msra.mxu0 %v1108
      %1232 = vmatprep.subr.bf16.mxu0 0
      %1233 = vmatpush1.bf16.msra.mxu0 %v1114
      %1234 = vmatprep.subr.bf16.mxu0 0
      %1235 = vmatpush1.bf16.msra.mxu0 %v1120
      %1236 = vmatprep.subr.bf16.mxu0 0
      %1237 = vmatpush1.bf16.msra.mxu0 %v1126
      %1238 = vmatprep.subr.bf16.mxu0 0
      %1239 = vmatpush1.bf16.msra.mxu0 %v1132
      %1240 = vmatprep.subr.bf16.mxu0 0
      %1241 = vmatpush1.bf16.msra.mxu0 0
      %1242 = vmatprep.subr.bf16.mxu0 0
      %1243 = vmatpush1.bf16.msra.mxu0 0
      %1244 = vmatprep.subr.bf16.mxu0 0
      %1245 = vmatpush1.bf16.msra.mxu0 0
      %1246 = vmatprep.subr.bf16.mxu0 0
      %1247 = vmatpush1.bf16.msra.mxu0 0
      %1248 = vmatprep.subr.bf16.mxu0 0
      %1249 = vmatpush1.bf16.msra.mxu0 0
      %1250 = vmatprep.subr.bf16.mxu0 0
      %1251 = vmatpush1.bf16.msra.mxu0 0
      %1252 = vmatprep.subr.bf16.mxu0 0
      %1253 = vmatpush1.bf16.msra.mxu0 0
      %1254 = vmatprep.mubr.bf16.mxu0 %v1179
      %1255 = vmatmul.mubr.bf16.gmra.mrb[0].mxu0 %v1073
      %v1256 = vpop.f32.mrb[0].mxu0
      %v1257 = vadd.f32 %v1061, %v1256
      %v1258 = vpop.f32.mrb[0].mxu0
      %v1259 = vpop.f32.mrb[0].mxu0
      %v1260 = vpop.f32.mrb[0].mxu0
      %1261 = vdwg.mxu0
      %v1262 = vmax.f32 %v1216, 0.0
      %v1263 = vmax.f32 %v1218, 0.0
      %v1264 = vmax.f32 %v1257, 0.0
      %1265 = vrot.lane.b32.xlu0 %v1262, 64
      %v1266 = vpop.permute.xlu0 %1265
      %v1267 = vsel %vm345, %v1266, %v1264
      %1271 = vrot.lane.b32.xlu0 %v1262, 96
      %v1272 = vpop.permute.xlu0 %1271
      %1273 = vrot.lane.b32.xlu0 %v1263, 96
      %v1274 = vpop.permute.xlu0 %1273
      %1275 = vrot.lane.b32.xlu0 %v1267, 96
      %v1276 = vpop.permute.xlu0 %1275
      %vm1277 = vcmask 785408
      %v1278 = vsel %vm1277, %v1272, %v1274
      %v1279 = vsel %vm1277, %v1274, %v1276
      %1282 = vst [vmem:[%s331] sm:$0xff] %v1278
      %1283 = vst [vmem:[%s331 + $0x8] sm:$0xff] %v1279
      %s1284 = smul.u32 2, %s23
      %p1285 = scmp.lt.s32.totalorder %s22, 1
      %s1286 = scalar_select %p1285, %s22, 1
      %p1287 = scmp.lt.s32.totalorder %s1284, 1
      %s1288 = scalar_select %p1287, %s1284, 1
      %s1289 = smul.addr %s1286, 2
      %s1290 = sadd.s32 %s1288, %s1289
      %s1291 = smul.addr %s1290, 8
      %s1292 = scalar_lea.vmem %s7, %s1291
      // Predicated region
      $region49: #{decoder_block_forward.1} parent=47 // pred_check
        %p1293 = pneg %p209
      $region50: #{decoder_block_forward.1} parent=47 // pred_check_branch
        %1295 = sbr.rel (%p1293) target = $region52
      $region51: #{decoder_block_forward.1} parent=47 // pred_region
        %s1296 = smul.u32 2, %s23
      $region52: #{decoder_block_forward.1} parent=47 // pred_fallthru
        _
    $region48: #{decoder_block_forward.1} parent=5 // pred_fallthru
      _
    %p1297 = scmp.le.s32.totalorder 2, %s13
    // Predicated region
    $region53: #{decoder_block_forward.1} parent=5 // pred_check
      %p1298 = pneg %p1297
    $region54: #{decoder_block_forward.1} parent=5 // pred_check_branch
      %1300 = sbr.rel (%p1298) target = $region56
    $region55: #{decoder_block_forward.1} parent=5 // pred_region
      %s1301 = ssub.s32 %s13, 2
      // Predicated region
      $region57: #{decoder_block_forward.1} parent=55 // pred_check
        %p1302 = pneg %p215
      $region58: #{decoder_block_forward.1} parent=55 // pred_check_branch
        %1304 = sbr.rel (%p1302) target = $region60
      $region59: #{decoder_block_forward.1} parent=55 // pred_region
        %s1305 = smul.u32 2, %s25
        %p1306 = scmp.lt.s32.totalorder %s24, 1
        %s1307 = scalar_select %p1306, %s24, 1
        %p1308 = scmp.lt.s32.totalorder %s1305, 1
        %s1309 = scalar_select %p1308, %s1305, 1
        %s1310 = smul.addr %s1307, 2
        %s1311 = sadd.s32 %s1309, %s1310
        %s1312 = smul.addr %s1311, 8
        %s1313 = scalar_lea.vmem %s7, %s1312
      $region60: #{decoder_block_forward.1} parent=55 // pred_fallthru
        _
    $region56: #{decoder_block_forward.1} parent=5 // pred_fallthru
      _
  $region6: #{decoder_block_forward.1} parent=0 // loop_footer
    %s17 = sadd.s32 1, %s13
  $region7: #{decoder_block_forward.1} parent=0 // loop_footer_branch
    %12 = sbr.rel target = $region3
  $region8: #{decoder_block_forward.1} parent=0 // loop_exit
    _

</llo_original>
